<compile_context>
chip_gen: v6e
topology: v6e:2x2x1
jax: 0.10.0
libtpu: 0.0.40
codegen_flags: <defaults>
</compile_context>

<pallas_src>
import numpy as np
import jax
import jax.numpy as jnp
from jax.experimental import pallas as pl
from jax.experimental.pallas import tpu as pltpu

L_IN, H1, H2 = 166, 500, 300
K_CONV = 30
L_CONV = H2 - K_CONV + 1            # 271
POOL = 4
L_POOL = L_CONV // POOL             # 67  (floor mode, like PyTorch MaxPool1d)
H3, L_OUT = 120, 163
POOL_GROUP = 128                    # each pool-phase group starts on a 128-aligned lane
N_TOEP = POOL * POOL_GROUP          # 512 fused-conv columns
L_OUT_PAD = 256                     # lane-dense padded output width (sliced back to 163)
MAX_TILE_B = 1024                   # largest batch tile (fits VMEM with big headroom)


def _round_up(n, m):
    return ((n + m - 1) // m) * m


def nn5_kernel(x_ref, w_in_ref, b_in_ref, w_h1_ref, b_h1_ref,
               toep_ref, b_conv_ref, w_h2_ref, b_h2_ref,
               w_out_ref, b_out_ref, o_ref):
    f32, bf16 = jnp.float32, jnp.bfloat16
    a = jnp.maximum(x_ref[...], 0.0)                                  # relu on bf16 input
    h = jnp.dot(a, w_in_ref[...], preferred_element_type=f32) + b_in_ref[...]
    h = jnp.maximum(h, 0.0)
    h = jnp.dot(h.astype(bf16), w_h1_ref[...], preferred_element_type=f32) + b_h1_ref[...]
    h = jnp.maximum(h, 0.0)
    # Fused Conv1d (Toeplitz) + MaxPool gather: lane 128*k + t holds conv position 4*t + k.
    g = jnp.dot(h.astype(bf16), toep_ref[...], preferred_element_type=f32) + b_conv_ref[...]
    g = jnp.maximum(g, 0.0)                                           # relu before max (monotone)
    p = jnp.maximum(
        jnp.maximum(g[:, 0:L_POOL],
                    g[:, POOL_GROUP:POOL_GROUP + L_POOL]),
        jnp.maximum(g[:, 2 * POOL_GROUP:2 * POOL_GROUP + L_POOL],
                    g[:, 3 * POOL_GROUP:3 * POOL_GROUP + L_POOL]))
    q = jnp.dot(p.astype(bf16), w_h2_ref[...], preferred_element_type=f32) + b_h2_ref[...]
    q = jnp.maximum(q, 0.0)
    o_ref[...] = jnp.dot(q.astype(bf16), w_out_ref[...], preferred_element_type=f32) + b_out_ref[...]


def make_params(key):
    ks = jax.random.split(key, 10)
    f32, bf16 = jnp.float32, jnp.bfloat16

    def lin(kw, kb, fan_in, fan_out):
        bound = 1.0 / np.sqrt(fan_in)
        # weights pre-transposed as (in, out) so the kernel does x @ W; bf16 storage
        w = jax.random.uniform(kw, (fan_in, fan_out), f32, -bound, bound).astype(bf16)
        b = jax.random.uniform(kb, (1, fan_out), f32, -bound, bound)
        return w, b

    w_in, b_in = lin(ks[0], ks[1], L_IN, H1)
    w_h1, b_h1 = lin(ks[2], ks[3], H1, H2)
    cbound = 1.0 / np.sqrt(K_CONV)
    conv_w = jax.random.uniform(ks[4], (K_CONV,), f32, -cbound, cbound).astype(bf16)
    conv_b = jax.random.uniform(ks[5], (1, 1), f32, -cbound, cbound)
    w_h2, b_h2 = lin(ks[6], ks[7], L_POOL, H3)
    w_out, b_out = lin(ks[8], ks[9], H3, L_OUT)

    # Pad the output linear to a lane-dense 256 columns (extra columns are zero).
    w_out_p = jnp.zeros((H3, L_OUT_PAD), bf16).at[:, :L_OUT].set(w_out)
    b_out_p = jnp.zeros((1, L_OUT_PAD), f32).at[:, :L_OUT].set(b_out)

    # Fused Toeplitz + pool-gather matrix: column 128*k + t holds the conv taps for
    # conv output position 4*t + k, i.e. y_fused[:, 128k+t] = conv(h)[4t+k].
    cw = np.asarray(conv_w.astype(f32))
    toep_pooled = np.zeros((H2, N_TOEP), np.float32)
    for t in range(L_POOL):
        for k in range(POOL):
            pos = POOL * t + k
            toep_pooled[pos:pos + K_CONV, POOL_GROUP * k + t] = cw
    toep_pooled = jnp.asarray(toep_pooled, bf16)

    # Conv bias broadcast to a lane-dense f32 row (same value on every fused column).
    b_conv_vec = jnp.full((1, N_TOEP), conv_b[0, 0], f32)

    return dict(w_in=w_in, b_in=b_in, w_h1=w_h1, b_h1=b_h1,
                conv_w=conv_w, conv_b=conv_b,
                toep_pooled=toep_pooled, b_conv_vec=b_conv_vec,
                w_h2=w_h2, b_h2=b_h2, w_out=w_out_p, b_out=b_out_p)


def _choose_grid(batch):
    """Pick (tile_b, steps). Tile sized from B (no gross zero-padding); for B > 256
    force an even step count (>=2) so the 'parallel' axis actually splits across
    v7x's two TensorCores; cap the tile at MAX_TILE_B."""
    if batch <= 256:
        steps = 1
    else:
        steps = max(2, pl.cdiv(batch, MAX_TILE_B))
        steps += steps % 2
    tile = max(8, _round_up(pl.cdiv(batch, steps), 8))
    return tile, steps


@jax.jit
def nn5_forward(x, params):
    B = x.shape[0]
    # bf16 input: numerically identical (first matmul input was bf16 anyway), half the DMA bytes.
    x2 = x.reshape(B, L_IN).astype(jnp.bfloat16)

    tile_b, steps = _choose_grid(B)
    b_pad = tile_b * steps
    if b_pad != B:
        x2 = jnp.pad(x2, ((0, b_pad - B), (0, 0)))
    grid = (steps,)

    args = [x2,
            params["w_in"], params["b_in"],
            params["w_h1"], params["b_h1"],
            params["toep_pooled"], params["b_conv_vec"],
            params["w_h2"], params["b_h2"],
            params["w_out"], params["b_out"]]

    const = lambda i: (0, 0)     # weights/biases: same block every step -> resident in VMEM
    in_specs = [
        pl.BlockSpec((tile_b, L_IN), lambda i: (i, 0)),               # x (batch-tiled, bf16)
        pl.BlockSpec((L_IN, H1), const),                              # w_in  (bf16)
        pl.BlockSpec((1, H1), const),                                 # b_in  (f32)
        pl.BlockSpec((H1, H2), const),                                # w_h1  (bf16)
        pl.BlockSpec((1, H2), const),                                 # b_h1  (f32)
        pl.BlockSpec((H2, N_TOEP), const),                            # fused Toeplitz (bf16)
        pl.BlockSpec((1, N_TOEP), const),                             # conv bias row (f32)
        pl.BlockSpec((L_POOL, H3), const),                            # w_h2  (bf16)
        pl.BlockSpec((1, H3), const),                                 # b_h2  (f32)
        pl.BlockSpec((H3, L_OUT_PAD), const),                         # w_out padded (bf16)
        pl.BlockSpec((1, L_OUT_PAD), const),                          # b_out padded (f32)
    ]
    out_specs = pl.BlockSpec((tile_b, L_OUT_PAD), lambda i: (i, 0))

    w_elems = (L_IN * H1 + H1 * H2 + H2 * N_TOEP + L_POOL * H3 + H3 * L_OUT_PAD)
    bias_elems = H1 + H2 + N_TOEP + H3 + L_OUT_PAD

    # Scoped-VMEM budget from actual buffers: x/out double-buffered blocks, double-buffered
    # bf16 weights + f32 biases, f32 intermediates, plus slack. v5e's default is only 16 MiB.
    vmem_need = (2 * 2 * tile_b * L_IN                       # x  bf16 x 2 buffers
                 + 2 * 4 * tile_b * L_OUT_PAD                # out f32 x 2 buffers
                 + 4 * tile_b * (H1 + H2 + N_TOEP + H3 + L_OUT_PAD)   # f32 intermediates
                 + 2 * (2 * w_elems + 4 * bias_elems)        # resident weights/biases (2 bufs)
                 + (4 << 20))                                # slack
    vmem_limit = int(min(max(vmem_need, 32 << 20), 64 << 20))

    cost = pl.CostEstimate(
        flops=2 * b_pad * w_elems,
        transcendentals=0,
        bytes_accessed=(2 * w_elems + 4 * bias_elems         # weights + biases
                        + 2 * b_pad * L_IN                   # bf16 input
                        + 4 * b_pad * L_OUT_PAD))            # f32 output

    out = pl.pallas_call(
        nn5_kernel,
        grid=grid,
        in_specs=in_specs,
        out_specs=out_specs,
        out_shape=jax.ShapeDtypeStruct((b_pad, L_OUT_PAD), jnp.float32),
        compiler_params=pltpu.CompilerParams(
            dimension_semantics=("parallel",),
            vmem_limit_bytes=vmem_limit),
        cost_estimate=cost,
    )(*args)
    return out[:B, :L_OUT].reshape(B, 1, L_OUT)


def nn5_reference(x, p):
    # Pure-JAX reference in f32 math (independent of the Toeplitz / pool-fusion tricks).
    B = x.shape[0]
    f32 = jnp.float32
    h = jnp.maximum(x.reshape(B, L_IN).astype(f32), 0.0)
    h = jnp.maximum(h @ p["w_in"].astype(f32) + p["b_in"], 0.0)
    h = jnp.maximum(h @ p["w_h1"].astype(f32) + p["b_h1"], 0.0)
    c = jax.lax.conv_general_dilated(
        h[:, None, :], p["conv_w"].astype(f32)[None, None, :],
        window_strides=(1,), padding="VALID",
        dimension_numbers=("NCH", "OIH", "NCH"))[:, 0, :] + p["conv_b"][0, 0]
    c = jnp.maximum(c, 0.0)
    pooled = c[:, :L_POOL * POOL].reshape(B, L_POOL, POOL).max(axis=-1)
    q = jnp.maximum(pooled @ p["w_h2"].astype(f32) + p["b_h2"], 0.0)
    out = q @ p["w_out"].astype(f32) + p["b_out"]
    return out[:, :L_OUT].reshape(B, 1, L_OUT)


if __name__ == "__main__":
    key = jax.random.PRNGKey(0)
    k_param, k_x = jax.random.split(key)
    params = make_params(k_param)
    x = jax.random.normal(k_x, (8, 1, L_IN), jnp.float32)

    out = jax.block_until_ready(nn5_forward(x, params))
    ref = jax.block_until_ready(nn5_reference(x, params))

    assert out.shape == (8, 1, L_OUT), out.shape
    # bf16 matmul inputs with f32 accumulation: expect <~1% deviation from the f32 reference.
    assert bool(jnp.allclose(out, ref, rtol=2e-2, atol=2e-2)), "kernel/reference mismatch"
    print("KERNEL_OK")
</pallas_src>

<mosaic_0001>
module attributes {stable_mosaic.version = 11 : i64} {
  func.func @nn5_kernel(%arg0: i32, %arg1: memref<8x166xbf16, #tpu.memory_space<vmem>>, %arg2: memref<166x500xbf16, #tpu.memory_space<vmem>>, %arg3: memref<1x500xf32, #tpu.memory_space<vmem>>, %arg4: memref<500x300xbf16, #tpu.memory_space<vmem>>, %arg5: memref<1x300xf32, #tpu.memory_space<vmem>>, %arg6: memref<300x512xbf16, #tpu.memory_space<vmem>>, %arg7: memref<1x512xf32, #tpu.memory_space<vmem>>, %arg8: memref<67x120xbf16, #tpu.memory_space<vmem>>, %arg9: memref<1x120xf32, #tpu.memory_space<vmem>>, %arg10: memref<120x256xbf16, #tpu.memory_space<vmem>>, %arg11: memref<1x256xf32, #tpu.memory_space<vmem>>, %arg12: memref<8x256xf32, #tpu.memory_space<vmem>>) attributes {dimension_semantics = [#tpu.dimension_semantics<parallel>], iteration_bounds = array<i64: 1>, scalar_prefetch = 0 : i64, scratch_operands = 0 : i64, tpu.core_type = #tpu.core_type<tc>, window_params = [{transform_indices = @transform_0, window_bounds = array<i64: 8, 166>}, {pipeline_mode = #tpu.pipeline_mode<synchronous>, transform_indices = @transform_1, window_bounds = array<i64: 166, 500>}, {pipeline_mode = #tpu.pipeline_mode<synchronous>, transform_indices = @transform_2, window_bounds = array<i64: 1, 500>}, {pipeline_mode = #tpu.pipeline_mode<synchronous>, transform_indices = @transform_3, window_bounds = array<i64: 500, 300>}, {pipeline_mode = #tpu.pipeline_mode<synchronous>, transform_indices = @transform_4, window_bounds = array<i64: 1, 300>}, {pipeline_mode = #tpu.pipeline_mode<synchronous>, transform_indices = @transform_5, window_bounds = array<i64: 300, 512>}, {pipeline_mode = #tpu.pipeline_mode<synchronous>, transform_indices = @transform_6, window_bounds = array<i64: 1, 512>}, {pipeline_mode = #tpu.pipeline_mode<synchronous>, transform_indices = @transform_7, window_bounds = array<i64: 67, 120>}, {pipeline_mode = #tpu.pipeline_mode<synchronous>, transform_indices = @transform_8, window_bounds = array<i64: 1, 120>}, {pipeline_mode = #tpu.pipeline_mode<synchronous>, transform_indices = @transform_9, window_bounds = array<i64: 120, 256>}, {pipeline_mode = #tpu.pipeline_mode<synchronous>, transform_indices = @transform_10, window_bounds = array<i64: 1, 256>}, {transform_indices = @transform_11, window_bounds = array<i64: 8, 256>}]} {
    %c0 = arith.constant 0 : index
    %c0_0 = arith.constant 0 : index
    %0 = vector.load %arg1[%c0, %c0_0] : memref<8x166xbf16, #tpu.memory_space<vmem>>, vector<8x166xbf16>
    %cst = arith.constant 0.000000e+00 : bf16
    %1 = vector.broadcast %cst : bf16 to vector<8x166xbf16>
    %2 = arith.maximumf %0, %1 : vector<8x166xbf16>
    %c0_1 = arith.constant 0 : index
    %c0_2 = arith.constant 0 : index
    %3 = vector.load %arg2[%c0_1, %c0_2] : memref<166x500xbf16, #tpu.memory_space<vmem>>, vector<166x500xbf16>
    %cst_3 = arith.constant dense<0.000000e+00> : vector<8x500xf32>
    %4 = tpu.matmul %2, %3, %cst_3 {dimension_numbers = #tpu.dot_dimension_numbers<[1], [0], [0], [1], [0, 0, 1, 1], [], []>} : vector<8x166xbf16>, vector<166x500xbf16>, vector<8x500xf32> -> vector<8x500xf32>
    %c0_4 = arith.constant 0 : index
    %c0_5 = arith.constant 0 : index
    %5 = vector.load %arg3[%c0_4, %c0_5] : memref<1x500xf32, #tpu.memory_space<vmem>>, vector<1x500xf32>
    %6 = vector.broadcast %5 : vector<1x500xf32> to vector<8x500xf32>
    %7 = arith.addf %4, %6 : vector<8x500xf32>
    %cst_6 = arith.constant 0.000000e+00 : f32
    %8 = vector.broadcast %cst_6 : f32 to vector<8x500xf32>
    %9 = arith.maximumf %7, %8 : vector<8x500xf32>
    %10 = arith.truncf %9 : vector<8x500xf32> to vector<8x500xbf16>
    %c0_7 = arith.constant 0 : index
    %c0_8 = arith.constant 0 : index
    %11 = vector.load %arg4[%c0_7, %c0_8] : memref<500x300xbf16, #tpu.memory_space<vmem>>, vector<500x300xbf16>
    %cst_9 = arith.constant dense<0.000000e+00> : vector<8x300xf32>
    %12 = tpu.matmul %10, %11, %cst_9 {dimension_numbers = #tpu.dot_dimension_numbers<[1], [0], [0], [1], [0, 0, 1, 1], [], []>} : vector<8x500xbf16>, vector<500x300xbf16>, vector<8x300xf32> -> vector<8x300xf32>
    %c0_10 = arith.constant 0 : index
    %c0_11 = arith.constant 0 : index
    %13 = vector.load %arg5[%c0_10, %c0_11] : memref<1x300xf32, #tpu.memory_space<vmem>>, vector<1x300xf32>
    %14 = vector.broadcast %13 : vector<1x300xf32> to vector<8x300xf32>
    %15 = arith.addf %12, %14 : vector<8x300xf32>
    %cst_12 = arith.constant 0.000000e+00 : f32
    %16 = vector.broadcast %cst_12 : f32 to vector<8x300xf32>
    %17 = arith.maximumf %15, %16 : vector<8x300xf32>
    %18 = arith.truncf %17 : vector<8x300xf32> to vector<8x300xbf16>
    %c0_13 = arith.constant 0 : index
    %c0_14 = arith.constant 0 : index
    %19 = vector.load %arg6[%c0_13, %c0_14] : memref<300x512xbf16, #tpu.memory_space<vmem>>, vector<300x512xbf16>
    %cst_15 = arith.constant dense<0.000000e+00> : vector<8x512xf32>
    %20 = tpu.matmul %18, %19, %cst_15 {dimension_numbers = #tpu.dot_dimension_numbers<[1], [0], [0], [1], [0, 0, 1, 1], [], []>} : vector<8x300xbf16>, vector<300x512xbf16>, vector<8x512xf32> -> vector<8x512xf32>
    %c0_16 = arith.constant 0 : index
    %c0_17 = arith.constant 0 : index
    %21 = vector.load %arg7[%c0_16, %c0_17] : memref<1x512xf32, #tpu.memory_space<vmem>>, vector<1x512xf32>
    %22 = vector.broadcast %21 : vector<1x512xf32> to vector<8x512xf32>
    %23 = arith.addf %20, %22 : vector<8x512xf32>
    %cst_18 = arith.constant 0.000000e+00 : f32
    %24 = vector.broadcast %cst_18 : f32 to vector<8x512xf32>
    %25 = arith.maximumf %23, %24 : vector<8x512xf32>
    %26 = vector.extract_strided_slice %25 {offsets = [0, 0], sizes = [8, 67], strides = [1, 1]} : vector<8x512xf32> to vector<8x67xf32>
    %27 = vector.extract_strided_slice %25 {offsets = [0, 128], sizes = [8, 67], strides = [1, 1]} : vector<8x512xf32> to vector<8x67xf32>
    %28 = arith.maximumf %26, %27 : vector<8x67xf32>
    %29 = vector.extract_strided_slice %25 {offsets = [0, 256], sizes = [8, 67], strides = [1, 1]} : vector<8x512xf32> to vector<8x67xf32>
    %30 = vector.extract_strided_slice %25 {offsets = [0, 384], sizes = [8, 67], strides = [1, 1]} : vector<8x512xf32> to vector<8x67xf32>
    %31 = arith.maximumf %29, %30 : vector<8x67xf32>
    %32 = arith.maximumf %28, %31 : vector<8x67xf32>
    %33 = arith.truncf %32 : vector<8x67xf32> to vector<8x67xbf16>
    %c0_19 = arith.constant 0 : index
    %c0_20 = arith.constant 0 : index
    %34 = vector.load %arg8[%c0_19, %c0_20] : memref<67x120xbf16, #tpu.memory_space<vmem>>, vector<67x120xbf16>
    %cst_21 = arith.constant dense<0.000000e+00> : vector<8x120xf32>
    %35 = tpu.matmul %33, %34, %cst_21 {dimension_numbers = #tpu.dot_dimension_numbers<[1], [0], [0], [1], [0, 0, 1, 1], [], []>} : vector<8x67xbf16>, vector<67x120xbf16>, vector<8x120xf32> -> vector<8x120xf32>
    %c0_22 = arith.constant 0 : index
    %c0_23 = arith.constant 0 : index
    %36 = vector.load %arg9[%c0_22, %c0_23] : memref<1x120xf32, #tpu.memory_space<vmem>>, vector<1x120xf32>
    %37 = vector.broadcast %36 : vector<1x120xf32> to vector<8x120xf32>
    %38 = arith.addf %35, %37 : vector<8x120xf32>
    %cst_24 = arith.constant 0.000000e+00 : f32
    %39 = vector.broadcast %cst_24 : f32 to vector<8x120xf32>
    %40 = arith.maximumf %38, %39 : vector<8x120xf32>
    %41 = arith.truncf %40 : vector<8x120xf32> to vector<8x120xbf16>
    %c0_25 = arith.constant 0 : index
    %c0_26 = arith.constant 0 : index
    %42 = vector.load %arg10[%c0_25, %c0_26] : memref<120x256xbf16, #tpu.memory_space<vmem>>, vector<120x256xbf16>
    %cst_27 = arith.constant dense<0.000000e+00> : vector<8x256xf32>
    %43 = tpu.matmul %41, %42, %cst_27 {dimension_numbers = #tpu.dot_dimension_numbers<[1], [0], [0], [1], [0, 0, 1, 1], [], []>} : vector<8x120xbf16>, vector<120x256xbf16>, vector<8x256xf32> -> vector<8x256xf32>
    %c0_28 = arith.constant 0 : index
    %c0_29 = arith.constant 0 : index
    %44 = vector.load %arg11[%c0_28, %c0_29] : memref<1x256xf32, #tpu.memory_space<vmem>>, vector<1x256xf32>
    %45 = vector.broadcast %44 : vector<1x256xf32> to vector<8x256xf32>
    %46 = arith.addf %43, %45 : vector<8x256xf32>
    %c0_30 = arith.constant 0 : index
    %c0_31 = arith.constant 0 : index
    %47 = vector.load %arg12[%c0_30, %c0_31] : memref<8x256xf32, #tpu.memory_space<vmem>>, vector<8x256xf32>
    tpu.vector_store %arg12[%c0_30, %c0_31], %46 {strides = array<i32>} : memref<8x256xf32, #tpu.memory_space<vmem>>, vector<8x256xf32>,
    return
  }
  func.func @transform_0(%arg0: i32) -> (i32, i32) {
    %c0_i32 = arith.constant 0 : i32
    %c0_i32_0 = arith.constant 0 : i32
    return %arg0, %c0_i32 : i32, i32
  }
  func.func @transform_1(%arg0: i32) -> (i32, i32) {
    %c0_i32 = arith.constant 0 : i32
    %c0_i32_0 = arith.constant 0 : i32
    %c0_i32_1 = arith.constant 0 : i32
    return %c0_i32, %c0_i32_0 : i32, i32
  }
  func.func @transform_2(%arg0: i32) -> (i32, i32) {
    %c0_i32 = arith.constant 0 : i32
    %c0_i32_0 = arith.constant 0 : i32
    %c0_i32_1 = arith.constant 0 : i32
    return %c0_i32, %c0_i32_0 : i32, i32
  }
  func.func @transform_3(%arg0: i32) -> (i32, i32) {
    %c0_i32 = arith.constant 0 : i32
    %c0_i32_0 = arith.constant 0 : i32
    %c0_i32_1 = arith.constant 0 : i32
    return %c0_i32, %c0_i32_0 : i32, i32
  }
  func.func @transform_4(%arg0: i32) -> (i32, i32) {
    %c0_i32 = arith.constant 0 : i32
    %c0_i32_0 = arith.constant 0 : i32
    %c0_i32_1 = arith.constant 0 : i32
    return %c0_i32, %c0_i32_0 : i32, i32
  }
  func.func @transform_5(%arg0: i32) -> (i32, i32) {
    %c0_i32 = arith.constant 0 : i32
    %c0_i32_0 = arith.constant 0 : i32
    %c0_i32_1 = arith.constant 0 : i32
    return %c0_i32, %c0_i32_0 : i32, i32
  }
  func.func @transform_6(%arg0: i32) -> (i32, i32) {
    %c0_i32 = arith.constant 0 : i32
    %c0_i32_0 = arith.constant 0 : i32
    %c0_i32_1 = arith.constant 0 : i32
    return %c0_i32, %c0_i32_0 : i32, i32
  }
  func.func @transform_7(%arg0: i32) -> (i32, i32) {
    %c0_i32 = arith.constant 0 : i32
    %c0_i32_0 = arith.constant 0 : i32
    %c0_i32_1 = arith.constant 0 : i32
    return %c0_i32, %c0_i32_0 : i32, i32
  }
  func.func @transform_8(%arg0: i32) -> (i32, i32) {
    %c0_i32 = arith.constant 0 : i32
    %c0_i32_0 = arith.constant 0 : i32
    %c0_i32_1 = arith.constant 0 : i32
    return %c0_i32, %c0_i32_0 : i32, i32
  }
  func.func @transform_9(%arg0: i32) -> (i32, i32) {
    %c0_i32 = arith.constant 0 : i32
    %c0_i32_0 = arith.constant 0 : i32
    %c0_i32_1 = arith.constant 0 : i32
    return %c0_i32, %c0_i32_0 : i32, i32
  }
  func.func @transform_10(%arg0: i32) -> (i32, i32) {
    %c0_i32 = arith.constant 0 : i32
    %c0_i32_0 = arith.constant 0 : i32
    %c0_i32_1 = arith.constant 0 : i32
    return %c0_i32, %c0_i32_0 : i32, i32
  }
  func.func @transform_11(%arg0: i32) -> (i32, i32) {
    %c0_i32 = arith.constant 0 : i32
    %c0_i32_0 = arith.constant 0 : i32
    return %arg0, %c0_i32 : i32, i32
  }
}

</mosaic_0001>

<llo_original>
// kernel: nn5_forward.1
$region0: #{nn5_forward.1}
  #allocation0 [shape = 'u32[]', space=smem, size = 0x4, offset = 0x4, fixed_abs, tag = 'smem constant byte address 0x4 - core index']
  #allocation1 [shape = 'u32[144,128]{1,0:T(1,128)}', space=vmem, size = 0x12000, scoped, tag = 'internal scratch']
  %s0 = inlined_call_operand.vmem [shape: bf16[8,166], index: 0, kind: input, shape index: {}]
  %s1 = inlined_call_operand.vmem [shape: bf16[166,500], index: 1, kind: input, shape index: {}]
  %s2 = inlined_call_operand.vmem [shape: f32[1,500], index: 2, kind: input, shape index: {}]
  %s3 = inlined_call_operand.vmem [shape: bf16[500,300], index: 3, kind: input, shape index: {}]
  %s4 = inlined_call_operand.vmem [shape: f32[1,300], index: 4, kind: input, shape index: {}]
  %s5 = inlined_call_operand.vmem [shape: bf16[300,512], index: 5, kind: input, shape index: {}]
  %s6 = inlined_call_operand.vmem [shape: f32[1,512], index: 6, kind: input, shape index: {}]
  %s7 = inlined_call_operand.vmem [shape: bf16[67,120], index: 7, kind: input, shape index: {}]
  %s8 = inlined_call_operand.vmem [shape: f32[1,120], index: 8, kind: input, shape index: {}]
  %s9 = inlined_call_operand.vmem [shape: bf16[120,256], index: 9, kind: input, shape index: {}]
  %s10 = inlined_call_operand.vmem [shape: f32[1,256], index: 10, kind: input, shape index: {}]
  %s11 = inlined_call_operand.vmem [shape: f32[8,256], index: 11, kind: output, shape index: {}]
  %s12 = sld [smem:[#allocation0]]
  $region54: #{nn5_forward.1} parent=0
    _
  %s14 = ssub.s32 1, %s12
  %s15 = scalar_select 0, %s14, %s12
  // Predicated region
  $region2: #{nn5_forward.1} parent=0 // pred_check
    _
  $region3: #{nn5_forward.1} parent=0 // pred_check_branch
    %17 = sbr.rel (0) target = $region5
  $region4: #{nn5_forward.1} parent=0 // pred_region
    _
  $region5: #{nn5_forward.1} parent=0 // pred_fallthru
    _
  // Predicated region
  $region6: #{nn5_forward.1} parent=0 // pred_check
    _
  $region7: #{nn5_forward.1} parent=0 // pred_check_branch
    %19 = sbr.rel (0) target = $region9
  $region8: #{nn5_forward.1} parent=0 // pred_region
    _
  $region9: #{nn5_forward.1} parent=0 // pred_fallthru
    _
  // Predicated region
  $region10: #{nn5_forward.1} parent=0 // pred_check
    _
  $region11: #{nn5_forward.1} parent=0 // pred_check_branch
    %21 = sbr.rel (0) target = $region13
  $region12: #{nn5_forward.1} parent=0 // pred_region
    _
  $region13: #{nn5_forward.1} parent=0 // pred_fallthru
    _
  // Predicated region
  $region14: #{nn5_forward.1} parent=0 // pred_check
    _
  $region15: #{nn5_forward.1} parent=0 // pred_check_branch
    %23 = sbr.rel (0) target = $region17
  $region16: #{nn5_forward.1} parent=0 // pred_region
    _
  $region17: #{nn5_forward.1} parent=0 // pred_fallthru
    _
  // Predicated region
  $region18: #{nn5_forward.1} parent=0 // pred_check
    _
  $region19: #{nn5_forward.1} parent=0 // pred_check_branch
    %25 = sbr.rel (0) target = $region21
  $region20: #{nn5_forward.1} parent=0 // pred_region
    _
  $region21: #{nn5_forward.1} parent=0 // pred_fallthru
    _
  // Predicated region
  $region22: #{nn5_forward.1} parent=0 // pred_check
    _
  $region23: #{nn5_forward.1} parent=0 // pred_check_branch
    %27 = sbr.rel (0) target = $region25
  $region24: #{nn5_forward.1} parent=0 // pred_region
    _
  $region25: #{nn5_forward.1} parent=0 // pred_fallthru
    _
  // Predicated region
  $region26: #{nn5_forward.1} parent=0 // pred_check
    _
  $region27: #{nn5_forward.1} parent=0 // pred_check_branch
    %29 = sbr.rel (0) target = $region29
  $region28: #{nn5_forward.1} parent=0 // pred_region
    _
  $region29: #{nn5_forward.1} parent=0 // pred_fallthru
    _
  // Predicated region
  $region30: #{nn5_forward.1} parent=0 // pred_check
    _
  $region31: #{nn5_forward.1} parent=0 // pred_check_branch
    %31 = sbr.rel (0) target = $region33
  $region32: #{nn5_forward.1} parent=0 // pred_region
    _
  $region33: #{nn5_forward.1} parent=0 // pred_fallthru
    _
  // Predicated region
  $region34: #{nn5_forward.1} parent=0 // pred_check
    _
  $region35: #{nn5_forward.1} parent=0 // pred_check_branch
    %33 = sbr.rel (0) target = $region37
  $region36: #{nn5_forward.1} parent=0 // pred_region
    _
  $region37: #{nn5_forward.1} parent=0 // pred_fallthru
    _
  // Predicated region
  $region38: #{nn5_forward.1} parent=0 // pred_check
    _
  $region39: #{nn5_forward.1} parent=0 // pred_check_branch
    %35 = sbr.rel (0) target = $region41
  $region40: #{nn5_forward.1} parent=0 // pred_region
    _
  $region41: #{nn5_forward.1} parent=0 // pred_fallthru
    _
  // Predicated region
  $region42: #{nn5_forward.1} parent=0 // pred_check
    _
  $region43: #{nn5_forward.1} parent=0 // pred_check_branch
    %37 = sbr.rel (0) target = $region45
  $region44: #{nn5_forward.1} parent=0 // pred_region
    _
  $region45: #{nn5_forward.1} parent=0 // pred_fallthru
    _
  %v39 = vld [vmem:[%s0] sm:$0xff]
  %v40 = vmax.bf16 %v39, 0
  %v41 = vld [vmem:[%s1] sm:$0xff]
  %v42 = vld [vmem:[%s1 + $0x8] sm:$0xff]
  %v43 = vld [vmem:[%s1 + $0x10] sm:$0xff]
  %v44 = vld [vmem:[%s1 + $0x18] sm:$0xff]
  %v45 = vld [vmem:[%s1 + $0x20] sm:$0xff]
  %v46 = vld [vmem:[%s1 + $0x28] sm:$0xff]
  %v47 = vld [vmem:[%s1 + $0x30] sm:$0xff]
  %v48 = vld [vmem:[%s1 + $0x38] sm:$0xff]
  %v49 = vld [vmem:[%s1 + $0x40] sm:$0xff]
  %v50 = vld [vmem:[%s1 + $0x48] sm:$0xff]
  %v51 = vld [vmem:[%s1 + $0x50] sm:$0xff]
  %v52 = vld [vmem:[%s1 + $0x58] sm:$0xff]
  %v53 = vld [vmem:[%s1 + $0x60] sm:$0xff]
  %v54 = vld [vmem:[%s1 + $0x68] sm:$0xff]
  %v55 = vld [vmem:[%s1 + $0x70] sm:$0xff]
  %v56 = vld [vmem:[%s1 + $0x78] sm:$0xff]
  %v57 = vld [vmem:[%s1 + $0x80] sm:$0xff]
  %v58 = vld [vmem:[%s1 + $0x88] sm:$0xff]
  %v59 = vld [vmem:[%s1 + $0x90] sm:$0xff]
  %v60 = vld [vmem:[%s1 + $0x98] sm:$0xff]
  %v61 = vld [vmem:[%s1 + $0xa0] sm:$0xff]
  %v62 = vld [vmem:[%s1 + $0xa8] sm:$0xff]
  %v63 = vld [vmem:[%s1 + $0xb0] sm:$0xff]
  %v64 = vld [vmem:[%s1 + $0xb8] sm:$0xff]
  %v65 = vld [vmem:[%s1 + $0xc0] sm:$0xff]
  %v66 = vld [vmem:[%s1 + $0xc8] sm:$0xff]
  %v67 = vld [vmem:[%s1 + $0xd0] sm:$0xff]
  %v68 = vld [vmem:[%s1 + $0xd8] sm:$0xff]
  %v69 = vld [vmem:[%s1 + $0xe0] sm:$0xff]
  %v70 = vld [vmem:[%s1 + $0xe8] sm:$0xff]
  %v71 = vld [vmem:[%s1 + $0xf0] sm:$0xff]
  %v72 = vld [vmem:[%s1 + $0xf8] sm:$0xff]
  %v73 = vld [vmem:[%s1 + $0x100] sm:$0xff]
  %v74 = vld [vmem:[%s1 + $0x108] sm:$0xff]
  %v75 = vld [vmem:[%s1 + $0x110] sm:$0xff]
  %v76 = vld [vmem:[%s1 + $0x118] sm:$0xff]
  %v77 = vld [vmem:[%s1 + $0x120] sm:$0xff]
  %v78 = vld [vmem:[%s1 + $0x128] sm:$0xff]
  %v79 = vld [vmem:[%s1 + $0x130] sm:$0xff]
  %v80 = vld [vmem:[%s1 + $0x138] sm:$0xff]
  %v81 = vld [vmem:[%s1 + $0x140] sm:$0x77]
  %v82 = vld [vmem:[%s1 + $0x148] sm:$0x77]
  %v83 = vld [vmem:[%s2] sm:$0xf]
  %v85 = vlaneseq
  %v86 = vshrl.u32 %v85, 7
  %v87 = vsub.s32 0, %v86
  %v88 = vrot.slane %v83, %v87
  %v89 = vlaneseq
  %v90 = vshrl.u32 %v89, 7
  %v91 = vsub.s32 1, %v90
  %v92 = vrot.slane %v83, %v91
  %v93 = vlaneseq
  %v94 = vshrl.u32 %v93, 7
  %v95 = vsub.s32 2, %v94
  %v96 = vrot.slane %v83, %v95
  %v97 = vlaneseq
  %v98 = vshrl.u32 %v97, 7
  %v99 = vsub.s32 3, %v98
  %v100 = vrot.slane %v83, %v99
  %v106 = vunpack.c.l.b16 %v40
  %v107 = vunpack.c.h.b16 %v40
  %v108 = vpack.c.b16 %v106, %v106
  %v109 = vpack.c.b16 %v107, %v107
  %v153 = vunpack.c.l.b16 %v41
  %v154 = vunpack.c.h.b16 %v41
  %v155 = vunpack.c.l.b16 %v42
  %v156 = vunpack.c.h.b16 %v42
  %v157 = vunpack.c.l.b16 %v43
  %v158 = vunpack.c.h.b16 %v43
  %v159 = vunpack.c.l.b16 %v44
  %v160 = vunpack.c.h.b16 %v44
  %v161 = vunpack.c.l.b16 %v45
  %v162 = vunpack.c.h.b16 %v45
  %v163 = vunpack.c.l.b16 %v46
  %v164 = vunpack.c.h.b16 %v46
  %v165 = vunpack.c.l.b16 %v47
  %v166 = vunpack.c.h.b16 %v47
  %v167 = vunpack.c.l.b16 %v48
  %v168 = vunpack.c.h.b16 %v48
  %v169 = vunpack.c.l.b16 %v49
  %v170 = vunpack.c.h.b16 %v49
  %v171 = vunpack.c.l.b16 %v50
  %v172 = vunpack.c.h.b16 %v50
  %v173 = vunpack.c.l.b16 %v51
  %v174 = vunpack.c.h.b16 %v51
  %v175 = vunpack.c.l.b16 %v52
  %v176 = vunpack.c.h.b16 %v52
  %v177 = vunpack.c.l.b16 %v53
  %v178 = vunpack.c.h.b16 %v53
  %v179 = vunpack.c.l.b16 %v54
  %v180 = vunpack.c.h.b16 %v54
  %v181 = vunpack.c.l.b16 %v55
  %v182 = vunpack.c.h.b16 %v55
  %v183 = vunpack.c.l.b16 %v56
  %v184 = vunpack.c.h.b16 %v56
  %v185 = vunpack.c.l.b16 %v57
  %v186 = vunpack.c.h.b16 %v57
  %v187 = vunpack.c.l.b16 %v58
  %v188 = vunpack.c.h.b16 %v58
  %v189 = vunpack.c.l.b16 %v59
  %v190 = vunpack.c.h.b16 %v59
  %v191 = vunpack.c.l.b16 %v60
  %v192 = vunpack.c.h.b16 %v60
  %v193 = vunpack.c.l.b16 %v61
  %v194 = vunpack.c.h.b16 %v61
  %v195 = vunpack.c.l.b16 %v62
  %v196 = vunpack.c.h.b16 %v62
  %v197 = vunpack.c.l.b16 %v63
  %v198 = vunpack.c.h.b16 %v63
  %v199 = vunpack.c.l.b16 %v64
  %v200 = vunpack.c.h.b16 %v64
  %v201 = vunpack.c.l.b16 %v65
  %v202 = vunpack.c.h.b16 %v65
  %v203 = vunpack.c.l.b16 %v66
  %v204 = vunpack.c.h.b16 %v66
  %v205 = vunpack.c.l.b16 %v67
  %v206 = vunpack.c.h.b16 %v67
  %v207 = vunpack.c.l.b16 %v68
  %v208 = vunpack.c.h.b16 %v68
  %v209 = vunpack.c.l.b16 %v69
  %v210 = vunpack.c.h.b16 %v69
  %v211 = vunpack.c.l.b16 %v70
  %v212 = vunpack.c.h.b16 %v70
  %v213 = vunpack.c.l.b16 %v71
  %v214 = vunpack.c.h.b16 %v71
  %v215 = vunpack.c.l.b16 %v72
  %v216 = vunpack.c.h.b16 %v72
  %v217 = vunpack.c.l.b16 %v73
  %v218 = vunpack.c.h.b16 %v73
  %v219 = vunpack.c.l.b16 %v74
  %v220 = vunpack.c.h.b16 %v74
  %v221 = vunpack.c.l.b16 %v75
  %v222 = vunpack.c.h.b16 %v75
  %v223 = vunpack.c.l.b16 %v76
  %v224 = vunpack.c.h.b16 %v76
  %v225 = vunpack.c.l.b16 %v77
  %v226 = vunpack.c.h.b16 %v77
  %v227 = vunpack.c.l.b16 %v78
  %v228 = vunpack.c.h.b16 %v78
  %v229 = vunpack.c.l.b16 %v79
  %v230 = vunpack.c.h.b16 %v79
  %v231 = vunpack.c.l.b16 %v80
  %v232 = vunpack.c.h.b16 %v80
  %v233 = vunpack.c.l.b16 %v81
  %v234 = vunpack.c.h.b16 %v81
  %v235 = vunpack.c.l.b16 %v82
  %v236 = vunpack.c.h.b16 %v82
  %v237 = vpack.c.b16 %v157, %v153
  %v238 = vpack.c.b16 %v158, %v154
  %v239 = vpack.c.b16 %v159, %v155
  %v240 = vpack.c.b16 %v160, %v156
  %v241 = vpack.c.b16 %v165, %v161
  %v242 = vpack.c.b16 %v166, %v162
  %v243 = vpack.c.b16 %v167, %v163
  %v244 = vpack.c.b16 %v168, %v164
  %v245 = vpack.c.b16 %v173, %v169
  %v246 = vpack.c.b16 %v174, %v170
  %v247 = vpack.c.b16 %v175, %v171
  %v248 = vpack.c.b16 %v176, %v172
  %v249 = vpack.c.b16 %v181, %v177
  %v250 = vpack.c.b16 %v182, %v178
  %v251 = vpack.c.b16 %v183, %v179
  %v252 = vpack.c.b16 %v184, %v180
  %v253 = vpack.c.b16 %v189, %v185
  %v254 = vpack.c.b16 %v190, %v186
  %v255 = vpack.c.b16 %v191, %v187
  %v256 = vpack.c.b16 %v192, %v188
  %v257 = vpack.c.b16 %v197, %v193
  %v258 = vpack.c.b16 %v198, %v194
  %v259 = vpack.c.b16 %v199, %v195
  %v260 = vpack.c.b16 %v200, %v196
  %v261 = vpack.c.b16 %v205, %v201
  %v262 = vpack.c.b16 %v206, %v202
  %v263 = vpack.c.b16 %v207, %v203
  %v264 = vpack.c.b16 %v208, %v204
  %v265 = vpack.c.b16 %v213, %v209
  %v266 = vpack.c.b16 %v214, %v210
  %v267 = vpack.c.b16 %v215, %v211
  %v268 = vpack.c.b16 %v216, %v212
  %v269 = vpack.c.b16 %v221, %v217
  %v270 = vpack.c.b16 %v222, %v218
  %v271 = vpack.c.b16 %v223, %v219
  %v272 = vpack.c.b16 %v224, %v220
  %v273 = vpack.c.b16 %v229, %v225
  %v274 = vpack.c.b16 %v230, %v226
  %v275 = vpack.c.b16 %v231, %v227
  %v276 = vpack.c.b16 %v232, %v228
  %v277 = vpack.c.b16 %v233, %v233
  %v278 = vpack.c.b16 %v234, %v234
  %v279 = vpack.c.b16 %v235, %v235
  %v280 = vpack.c.b16 %v236, %v236
  %vm321 = vcmask 310272
  %v323 = vsel %vm321, %v109, 0
  %vm325 = vcmask 1042432
  %v327 = vsel %vm325, %v277, 0
  %v330 = vsel %vm325, %v278, 0
  %v333 = vsel %vm325, %v279, 0
  %v336 = vsel %vm325, %v280, 0
  %338 = vmatprep.subr.bf16.mxu0 %v266
  %339 = vmatpush1.bf16.msra.mxu0 %v265
  %340 = vmatprep.subr.bf16.mxu0 %v262
  %341 = vmatpush1.bf16.msra.mxu0 %v261
  %342 = vmatprep.subr.bf16.mxu0 %v258
  %343 = vmatpush1.bf16.msra.mxu0 %v257
  %344 = vmatprep.subr.bf16.mxu0 %v254
  %345 = vmatpush1.bf16.msra.mxu0 %v253
  %346 = vmatprep.subr.bf16.mxu0 %v250
  %347 = vmatpush1.bf16.msra.mxu0 %v249
  %348 = vmatprep.subr.bf16.mxu0 %v246
  %349 = vmatpush1.bf16.msra.mxu0 %v245
  %350 = vmatprep.subr.bf16.mxu0 %v242
  %351 = vmatpush1.bf16.msra.mxu0 %v241
  %352 = vmatprep.subr.bf16.mxu0 %v238
  %353 = vmatpush1.bf16.msra.mxu0 %v237
  %354 = vmatprep.subr.bf16.mxu0 0
  %355 = vmatpush2.bf16.msra.mxu0 0
  %356 = vmatprep.subr.bf16.mxu0 0
  %357 = vmatpush2.bf16.msra.mxu0 0
  %358 = vmatprep.subr.bf16.mxu0 0
  %359 = vmatpush2.bf16.msra.mxu0 0
  %360 = vmatprep.subr.bf16.mxu0 0
  %361 = vmatpush2.bf16.msra.mxu0 0
  %362 = vmatprep.subr.bf16.mxu0 0
  %363 = vmatpush2.bf16.msra.mxu0 0
  %364 = vmatprep.subr.bf16.mxu0 %v330
  %365 = vmatpush2.bf16.msra.mxu0 %v327
  %366 = vmatprep.subr.bf16.mxu0 %v274
  %367 = vmatpush2.bf16.msra.mxu0 %v273
  %368 = vmatprep.subr.bf16.mxu0 %v270
  %369 = vmatpush2.bf16.msra.mxu0 %v269
  %370 = vmatprep.mubr.bf16.mxu0 %v323
  %371 = vmatmul.mubr.bf16.gmra.mxu0 %v108
  %v372 = vpop.f32.mrf.mxu0
  %v373 = vadd.f32 %v88, %v372
  %v374 = vpop.f32.mrf.mxu0
  %v375 = vadd.f32 %v92, %v374
  %v376 = vpop.f32.mrf.mxu0
  %v377 = vpop.f32.mrf.mxu0
  %378 = vdwg.mxu0
  %379 = vmatprep.subr.bf16.mxu0 %v268
  %380 = vmatpush1.bf16.msra.mxu0 %v267
  %381 = vmatprep.subr.bf16.mxu0 %v264
  %382 = vmatpush1.bf16.msra.mxu0 %v263
  %383 = vmatprep.subr.bf16.mxu0 %v260
  %384 = vmatpush1.bf16.msra.mxu0 %v259
  %385 = vmatprep.subr.bf16.mxu0 %v256
  %386 = vmatpush1.bf16.msra.mxu0 %v255
  %387 = vmatprep.subr.bf16.mxu0 %v252
  %388 = vmatpush1.bf16.msra.mxu0 %v251
  %389 = vmatprep.subr.bf16.mxu0 %v248
  %390 = vmatpush1.bf16.msra.mxu0 %v247
  %391 = vmatprep.subr.bf16.mxu0 %v244
  %392 = vmatpush1.bf16.msra.mxu0 %v243
  %393 = vmatprep.subr.bf16.mxu0 %v240
  %394 = vmatpush1.bf16.msra.mxu0 %v239
  %395 = vmatprep.subr.bf16.mxu0 0
  %396 = vmatpush2.bf16.msra.mxu0 0
  %397 = vmatprep.subr.bf16.mxu0 0
  %398 = vmatpush2.bf16.msra.mxu0 0
  %399 = vmatprep.subr.bf16.mxu0 0
  %400 = vmatpush2.bf16.msra.mxu0 0
  %401 = vmatprep.subr.bf16.mxu0 0
  %402 = vmatpush2.bf16.msra.mxu0 0
  %403 = vmatprep.subr.bf16.mxu0 0
  %404 = vmatpush2.bf16.msra.mxu0 0
  %405 = vmatprep.subr.bf16.mxu0 %v336
  %406 = vmatpush2.bf16.msra.mxu0 %v333
  %407 = vmatprep.subr.bf16.mxu0 %v276
  %408 = vmatpush2.bf16.msra.mxu0 %v275
  %409 = vmatprep.subr.bf16.mxu0 %v272
  %410 = vmatpush2.bf16.msra.mxu0 %v271
  %411 = vmatprep.mubr.bf16.mxu0 %v323
  %412 = vmatmul.mubr.bf16.gmra.mxu0 %v108
  %v413 = vpop.f32.mrf.mxu0
  %v414 = vadd.f32 %v96, %v413
  %v415 = vpop.f32.mrf.mxu0
  %v416 = vadd.f32 %v100, %v415
  %v417 = vpop.f32.mrf.mxu0
  %v418 = vpop.f32.mrf.mxu0
  %419 = vdwg.mxu0
  %v420 = vmax.f32 %v373, 0.0
  %v421 = vmax.f32 %v375, 0.0
  %v422 = vmax.f32 %v414, 0.0
  %v423 = vmax.f32 %v416, 0.0
  %v424 = vpack.c.bf16 %v420, %v420
  %v425 = vpack.c.bf16 %v421, %v421
  %v426 = vpack.c.bf16 %v422, %v422
  %v427 = vpack.c.bf16 %v423, %v423
  %v428 = vld [vmem:[%s3] sm:$0xff]
  %v429 = vld [vmem:[%s3 + $0x8] sm:$0xf]
  %v430 = vld [vmem:[%s3 + $0xc] sm:$0xff]
  %v431 = vld [vmem:[%s3 + $0x14] sm:$0xf]
  %v432 = vld [vmem:[%s3 + $0x18] sm:$0xff]
  %v433 = vld [vmem:[%s3 + $0x20] sm:$0xf]
  %v434 = vld [vmem:[%s3 + $0x24] sm:$0xff]
  %v435 = vld [vmem:[%s3 + $0x2c] sm:$0xf]
  %v436 = vld [vmem:[%s3 + $0x30] sm:$0xff]
  %v437 = vld [vmem:[%s3 + $0x38] sm:$0xf]
  %v438 = vld [vmem:[%s3 + $0x3c] sm:$0xff]
  %v439 = vld [vmem:[%s3 + $0x44] sm:$0xf]
  %v440 = vld [vmem:[%s3 + $0x48] sm:$0xff]
  %v441 = vld [vmem:[%s3 + $0x50] sm:$0xf]
  %v442 = vld [vmem:[%s3 + $0x54] sm:$0xff]
  %v443 = vld [vmem:[%s3 + $0x5c] sm:$0xf]
  %v444 = vld [vmem:[%s3 + $0x60] sm:$0xff]
  %v445 = vld [vmem:[%s3 + $0x68] sm:$0xf]
  %v446 = vld [vmem:[%s3 + $0x6c] sm:$0xff]
  %v447 = vld [vmem:[%s3 + $0x74] sm:$0xf]
  %v448 = vld [vmem:[%s3 + $0x78] sm:$0xff]
  %v449 = vld [vmem:[%s3 + $0x80] sm:$0xf]
  %v450 = vld [vmem:[%s3 + $0x84] sm:$0xff]
  %v451 = vld [vmem:[%s3 + $0x8c] sm:$0xf]
  %v452 = vld [vmem:[%s3 + $0x90] sm:$0xff]
  %v453 = vld [vmem:[%s3 + $0x98] sm:$0xf]
  %v454 = vld [vmem:[%s3 + $0x9c] sm:$0xff]
  %v455 = vld [vmem:[%s3 + $0xa4] sm:$0xf]
  %v456 = vld [vmem:[%s3 + $0xa8] sm:$0xff]
  %v457 = vld [vmem:[%s3 + $0xb0] sm:$0xf]
  %v458 = vld [vmem:[%s3 + $0xb4] sm:$0xff]
  %v459 = vld [vmem:[%s3 + $0xbc] sm:$0xf]
  %v460 = vld [vmem:[%s3 + $0xc0] sm:$0xff]
  %v461 = vld [vmem:[%s3 + $0xc8] sm:$0xf]
  %v462 = vld [vmem:[%s3 + $0xcc] sm:$0xff]
  %v463 = vld [vmem:[%s3 + $0xd4] sm:$0xf]
  %v464 = vld [vmem:[%s3 + $0xd8] sm:$0xff]
  %v465 = vld [vmem:[%s3 + $0xe0] sm:$0xf]
  %v466 = vld [vmem:[%s3 + $0xe4] sm:$0xff]
  %v467 = vld [vmem:[%s3 + $0xec] sm:$0xf]
  %v468 = vld [vmem:[%s3 + $0xf0] sm:$0xff]
  %v469 = vld [vmem:[%s3 + $0xf8] sm:$0xf]
  %v470 = vld [vmem:[%s3 + $0xfc] sm:$0xff]
  %v471 = vld [vmem:[%s3 + $0x104] sm:$0xf]
  %v472 = vld [vmem:[%s3 + $0x108] sm:$0xff]
  %v473 = vld [vmem:[%s3 + $0x110] sm:$0xf]
  %v474 = vld [vmem:[%s3 + $0x114] sm:$0xff]
  %v475 = vld [vmem:[%s3 + $0x11c] sm:$0xf]
  %v476 = vld [vmem:[%s3 + $0x120] sm:$0xff]
  %v477 = vld [vmem:[%s3 + $0x128] sm:$0xf]
  %v478 = vld [vmem:[%s3 + $0x12c] sm:$0xff]
  %v479 = vld [vmem:[%s3 + $0x134] sm:$0xf]
  %v480 = vld [vmem:[%s3 + $0x138] sm:$0xff]
  %v481 = vld [vmem:[%s3 + $0x140] sm:$0xf]
  %v482 = vld [vmem:[%s3 + $0x144] sm:$0xff]
  %v483 = vld [vmem:[%s3 + $0x14c] sm:$0xf]
  %v484 = vld [vmem:[%s3 + $0x150] sm:$0xff]
  %v485 = vld [vmem:[%s3 + $0x158] sm:$0xf]
  %v486 = vld [vmem:[%s3 + $0x15c] sm:$0xff]
  %v487 = vld [vmem:[%s3 + $0x164] sm:$0xf]
  %v488 = vld [vmem:[%s3 + $0x168] sm:$0xff]
  %v489 = vld [vmem:[%s3 + $0x170] sm:$0xf]
  %v490 = vld [vmem:[%s3 + $0x174] sm:$0xff]
  %v491 = vld [vmem:[%s3 + $0x17c] sm:$0xf]
  %v492 = vld [vmem:[%s3 + $0x180] sm:$0xff]
  %v493 = vld [vmem:[%s3 + $0x188] sm:$0xf]
  %v494 = vld [vmem:[%s3 + $0x18c] sm:$0xff]
  %v495 = vld [vmem:[%s3 + $0x194] sm:$0xf]
  %v496 = vld [vmem:[%s3 + $0x198] sm:$0xff]
  %v497 = vld [vmem:[%s3 + $0x1a0] sm:$0xf]
  %v498 = vld [vmem:[%s3 + $0x1a4] sm:$0xff]
  %v499 = vld [vmem:[%s3 + $0x1ac] sm:$0xf]
  %v500 = vld [vmem:[%s3 + $0x1b0] sm:$0xff]
  %v501 = vld [vmem:[%s3 + $0x1b8] sm:$0xf]
  %v502 = vld [vmem:[%s3 + $0x1bc] sm:$0xff]
  %v503 = vld [vmem:[%s3 + $0x1c4] sm:$0xf]
  %v504 = vld [vmem:[%s3 + $0x1c8] sm:$0xff]
  %v505 = vld [vmem:[%s3 + $0x1d0] sm:$0xf]
  %v506 = vld [vmem:[%s3 + $0x1d4] sm:$0xff]
  %v507 = vld [vmem:[%s3 + $0x1dc] sm:$0xf]
  %v508 = vld [vmem:[%s3 + $0x1e0] sm:$0xff]
  %v509 = vld [vmem:[%s3 + $0x1e8] sm:$0xf]
  %v510 = vld [vmem:[%s3 + $0x1ec] sm:$0xff]
  %v511 = vld [vmem:[%s3 + $0x1f4] sm:$0xf]
  %v512 = vld [vmem:[%s3 + $0x1f8] sm:$0xff]
  %v513 = vld [vmem:[%s3 + $0x200] sm:$0xf]
  %v514 = vld [vmem:[%s3 + $0x204] sm:$0xff]
  %v515 = vld [vmem:[%s3 + $0x20c] sm:$0xf]
  %v516 = vld [vmem:[%s3 + $0x210] sm:$0xff]
  %v517 = vld [vmem:[%s3 + $0x218] sm:$0xf]
  %v518 = vld [vmem:[%s3 + $0x21c] sm:$0xff]
  %v519 = vld [vmem:[%s3 + $0x224] sm:$0xf]
  %v520 = vld [vmem:[%s3 + $0x228] sm:$0xff]
  %v521 = vld [vmem:[%s3 + $0x230] sm:$0xf]
  %v522 = vld [vmem:[%s3 + $0x234] sm:$0xff]
  %v523 = vld [vmem:[%s3 + $0x23c] sm:$0xf]
  %v524 = vld [vmem:[%s3 + $0x240] sm:$0xff]
  %v525 = vld [vmem:[%s3 + $0x248] sm:$0xf]
  %v526 = vld [vmem:[%s3 + $0x24c] sm:$0xff]
  %v527 = vld [vmem:[%s3 + $0x254] sm:$0xf]
  %v528 = vld [vmem:[%s3 + $0x258] sm:$0xff]
  %v529 = vld [vmem:[%s3 + $0x260] sm:$0xf]
  %v530 = vld [vmem:[%s3 + $0x264] sm:$0xff]
  %v531 = vld [vmem:[%s3 + $0x26c] sm:$0xf]
  %v532 = vld [vmem:[%s3 + $0x270] sm:$0xff]
  %v533 = vld [vmem:[%s3 + $0x278] sm:$0xf]
  %v534 = vld [vmem:[%s3 + $0x27c] sm:$0xff]
  %v535 = vld [vmem:[%s3 + $0x284] sm:$0xf]
  %v536 = vld [vmem:[%s3 + $0x288] sm:$0xff]
  %v537 = vld [vmem:[%s3 + $0x290] sm:$0xf]
  %v538 = vld [vmem:[%s3 + $0x294] sm:$0xff]
  %v539 = vld [vmem:[%s3 + $0x29c] sm:$0xf]
  %v540 = vld [vmem:[%s3 + $0x2a0] sm:$0xff]
  %v541 = vld [vmem:[%s3 + $0x2a8] sm:$0xf]
  %v542 = vld [vmem:[%s3 + $0x2ac] sm:$0xff]
  %v543 = vld [vmem:[%s3 + $0x2b4] sm:$0xf]
  %v544 = vld [vmem:[%s3 + $0x2b8] sm:$0xff]
  %v545 = vld [vmem:[%s3 + $0x2c0] sm:$0xf]
  %v546 = vld [vmem:[%s3 + $0x2c4] sm:$0xff]
  %v547 = vld [vmem:[%s3 + $0x2cc] sm:$0xf]
  %v548 = vld [vmem:[%s3 + $0x2d0] sm:$0xff]
  %v549 = vld [vmem:[%s3 + $0x2d8] sm:$0xf]
  %v550 = vld [vmem:[%s3 + $0x2dc] sm:$0xff]
  %v551 = vld [vmem:[%s3 + $0x2e4] sm:$0xf]
  %v552 = vld [vmem:[%s3 + $0x2e8] sm:$0x33]
  %v553 = vld [vmem:[%s3 + $0x2f0] sm:$0x3]
  %v554 = vld [vmem:[%s4] sm:$0x7]
  %v556 = vlaneseq
  %v557 = vshrl.u32 %v556, 7
  %v558 = vsub.s32 0, %v557
  %v559 = vrot.slane %v554, %v558
  %v560 = vlaneseq
  %v561 = vshrl.u32 %v560, 7
  %v562 = vsub.s32 1, %v561
  %v563 = vrot.slane %v554, %v562
  %v564 = vlaneseq
  %v565 = vshrl.u32 %v564, 7
  %v566 = vsub.s32 2, %v565
  %v567 = vrot.slane %v554, %v566
  %v697 = vunpack.c.l.b16 %v428
  %v698 = vunpack.c.h.b16 %v428
  %v699 = vunpack.c.l.b16 %v429
  %v700 = vunpack.c.l.b16 %v430
  %v701 = vunpack.c.h.b16 %v430
  %v702 = vunpack.c.l.b16 %v431
  %v703 = vunpack.c.l.b16 %v432
  %v704 = vunpack.c.h.b16 %v432
  %v705 = vunpack.c.l.b16 %v433
  %v706 = vunpack.c.l.b16 %v434
  %v707 = vunpack.c.h.b16 %v434
  %v708 = vunpack.c.l.b16 %v435
  %v709 = vunpack.c.l.b16 %v436
  %v710 = vunpack.c.h.b16 %v436
  %v711 = vunpack.c.l.b16 %v437
  %v712 = vunpack.c.l.b16 %v438
  %v713 = vunpack.c.h.b16 %v438
  %v714 = vunpack.c.l.b16 %v439
  %v715 = vunpack.c.l.b16 %v440
  %v716 = vunpack.c.h.b16 %v440
  %v717 = vunpack.c.l.b16 %v441
  %v718 = vunpack.c.l.b16 %v442
  %v719 = vunpack.c.h.b16 %v442
  %v720 = vunpack.c.l.b16 %v443
  %v721 = vunpack.c.l.b16 %v444
  %v722 = vunpack.c.h.b16 %v444
  %v723 = vunpack.c.l.b16 %v445
  %v724 = vunpack.c.l.b16 %v446
  %v725 = vunpack.c.h.b16 %v446
  %v726 = vunpack.c.l.b16 %v447
  %v727 = vunpack.c.l.b16 %v448
  %v728 = vunpack.c.h.b16 %v448
  %v729 = vunpack.c.l.b16 %v449
  %v730 = vunpack.c.l.b16 %v450
  %v731 = vunpack.c.h.b16 %v450
  %v732 = vunpack.c.l.b16 %v451
  %v733 = vunpack.c.l.b16 %v452
  %v734 = vunpack.c.h.b16 %v452
  %v735 = vunpack.c.l.b16 %v453
  %v736 = vunpack.c.l.b16 %v454
  %v737 = vunpack.c.h.b16 %v454
  %v738 = vunpack.c.l.b16 %v455
  %v739 = vunpack.c.l.b16 %v456
  %v740 = vunpack.c.h.b16 %v456
  %v741 = vunpack.c.l.b16 %v457
  %v742 = vunpack.c.l.b16 %v458
  %v743 = vunpack.c.h.b16 %v458
  %v744 = vunpack.c.l.b16 %v459
  %v745 = vunpack.c.l.b16 %v460
  %v746 = vunpack.c.h.b16 %v460
  %v747 = vunpack.c.l.b16 %v461
  %v748 = vunpack.c.l.b16 %v462
  %v749 = vunpack.c.h.b16 %v462
  %v750 = vunpack.c.l.b16 %v463
  %v751 = vunpack.c.l.b16 %v464
  %v752 = vunpack.c.h.b16 %v464
  %v753 = vunpack.c.l.b16 %v465
  %v754 = vunpack.c.l.b16 %v466
  %v755 = vunpack.c.h.b16 %v466
  %v756 = vunpack.c.l.b16 %v467
  %v757 = vunpack.c.l.b16 %v468
  %v758 = vunpack.c.h.b16 %v468
  %v759 = vunpack.c.l.b16 %v469
  %v760 = vunpack.c.l.b16 %v470
  %v761 = vunpack.c.h.b16 %v470
  %v762 = vunpack.c.l.b16 %v471
  %v763 = vunpack.c.l.b16 %v472
  %v764 = vunpack.c.h.b16 %v472
  %v765 = vunpack.c.l.b16 %v473
  %v766 = vunpack.c.l.b16 %v474
  %v767 = vunpack.c.h.b16 %v474
  %v768 = vunpack.c.l.b16 %v475
  %v769 = vunpack.c.l.b16 %v476
  %v770 = vunpack.c.h.b16 %v476
  %v771 = vunpack.c.l.b16 %v477
  %v772 = vunpack.c.l.b16 %v478
  %v773 = vunpack.c.h.b16 %v478
  %v774 = vunpack.c.l.b16 %v479
  %v775 = vunpack.c.l.b16 %v480
  %v776 = vunpack.c.h.b16 %v480
  %v777 = vunpack.c.l.b16 %v481
  %v778 = vunpack.c.l.b16 %v482
  %v779 = vunpack.c.h.b16 %v482
  %v780 = vunpack.c.l.b16 %v483
  %v781 = vunpack.c.l.b16 %v484
  %v782 = vunpack.c.h.b16 %v484
  %v783 = vunpack.c.l.b16 %v485
  %v784 = vunpack.c.l.b16 %v486
  %v785 = vunpack.c.h.b16 %v486
  %v786 = vunpack.c.l.b16 %v487
  %v787 = vunpack.c.l.b16 %v488
  %v788 = vunpack.c.h.b16 %v488
  %v789 = vunpack.c.l.b16 %v489
  %v790 = vunpack.c.l.b16 %v490
  %v791 = vunpack.c.h.b16 %v490
  %v792 = vunpack.c.l.b16 %v491
  %v793 = vunpack.c.l.b16 %v492
  %v794 = vunpack.c.h.b16 %v492
  %v795 = vunpack.c.l.b16 %v493
  %v796 = vunpack.c.l.b16 %v494
  %v797 = vunpack.c.h.b16 %v494
  %v798 = vunpack.c.l.b16 %v495
  %v799 = vunpack.c.l.b16 %v496
  %v800 = vunpack.c.h.b16 %v496
  %v801 = vunpack.c.l.b16 %v497
  %v802 = vunpack.c.l.b16 %v498
  %v803 = vunpack.c.h.b16 %v498
  %v804 = vunpack.c.l.b16 %v499
  %v805 = vunpack.c.l.b16 %v500
  %v806 = vunpack.c.h.b16 %v500
  %v807 = vunpack.c.l.b16 %v501
  %v808 = vunpack.c.l.b16 %v502
  %v809 = vunpack.c.h.b16 %v502
  %v810 = vunpack.c.l.b16 %v503
  %v811 = vunpack.c.l.b16 %v504
  %v812 = vunpack.c.h.b16 %v504
  %v813 = vunpack.c.l.b16 %v505
  %v814 = vunpack.c.l.b16 %v506
  %v815 = vunpack.c.h.b16 %v506
  %v816 = vunpack.c.l.b16 %v507
  %v817 = vunpack.c.l.b16 %v508
  %v818 = vunpack.c.h.b16 %v508
  %v819 = vunpack.c.l.b16 %v509
  %v820 = vunpack.c.l.b16 %v510
  %v821 = vunpack.c.h.b16 %v510
  %v822 = vunpack.c.l.b16 %v511
  %v823 = vunpack.c.l.b16 %v512
  %v824 = vunpack.c.h.b16 %v512
  %v825 = vunpack.c.l.b16 %v513
  %v826 = vunpack.c.l.b16 %v514
  %v827 = vunpack.c.h.b16 %v514
  %v828 = vunpack.c.l.b16 %v515
  %v829 = vunpack.c.l.b16 %v516
  %v830 = vunpack.c.h.b16 %v516
  %v831 = vunpack.c.l.b16 %v517
  %v832 = vunpack.c.l.b16 %v518
  %v833 = vunpack.c.h.b16 %v518
  %v834 = vunpack.c.l.b16 %v519
  %v835 = vunpack.c.l.b16 %v520
  %v836 = vunpack.c.h.b16 %v520
  %v837 = vunpack.c.l.b16 %v521
  %v838 = vunpack.c.l.b16 %v522
  %v839 = vunpack.c.h.b16 %v522
  %v840 = vunpack.c.l.b16 %v523
  %v841 = vunpack.c.l.b16 %v524
  %v842 = vunpack.c.h.b16 %v524
  %v843 = vunpack.c.l.b16 %v525
  %v844 = vunpack.c.l.b16 %v526
  %v845 = vunpack.c.h.b16 %v526
  %v846 = vunpack.c.l.b16 %v527
  %v847 = vunpack.c.l.b16 %v528
  %v848 = vunpack.c.h.b16 %v528
  %v849 = vunpack.c.l.b16 %v529
  %v850 = vunpack.c.l.b16 %v530
  %v851 = vunpack.c.h.b16 %v530
  %v852 = vunpack.c.l.b16 %v531
  %v853 = vunpack.c.l.b16 %v532
  %v854 = vunpack.c.h.b16 %v532
  %v855 = vunpack.c.l.b16 %v533
  %v856 = vunpack.c.l.b16 %v534
  %v857 = vunpack.c.h.b16 %v534
  %v858 = vunpack.c.l.b16 %v535
  %v859 = vunpack.c.l.b16 %v536
  %v860 = vunpack.c.h.b16 %v536
  %v861 = vunpack.c.l.b16 %v537
  %v862 = vunpack.c.l.b16 %v538
  %v863 = vunpack.c.h.b16 %v538
  %v864 = vunpack.c.l.b16 %v539
  %v865 = vunpack.c.l.b16 %v540
  %v866 = vunpack.c.h.b16 %v540
  %v867 = vunpack.c.l.b16 %v541
  %v868 = vunpack.c.l.b16 %v542
  %v869 = vunpack.c.h.b16 %v542
  %v870 = vunpack.c.l.b16 %v543
  %v871 = vunpack.c.l.b16 %v544
  %v872 = vunpack.c.h.b16 %v544
  %v873 = vunpack.c.l.b16 %v545
  %v874 = vunpack.c.l.b16 %v546
  %v875 = vunpack.c.h.b16 %v546
  %v876 = vunpack.c.l.b16 %v547
  %v877 = vunpack.c.l.b16 %v548
  %v878 = vunpack.c.h.b16 %v548
  %v879 = vunpack.c.l.b16 %v549
  %v880 = vunpack.c.l.b16 %v550
  %v881 = vunpack.c.h.b16 %v550
  %v882 = vunpack.c.l.b16 %v551
  %v883 = vunpack.c.l.b16 %v552
  %v884 = vunpack.c.h.b16 %v552
  %v885 = vunpack.c.l.b16 %v553
  %v886 = vpack.c.b16 %v700, %v697
  %v887 = vpack.c.b16 %v701, %v698
  %v888 = vpack.c.b16 %v702, %v699
  %v889 = vpack.c.b16 %v706, %v703
  %v890 = vpack.c.b16 %v707, %v704
  %v891 = vpack.c.b16 %v708, %v705
  %v892 = vpack.c.b16 %v712, %v709
  %v893 = vpack.c.b16 %v713, %v710
  %v894 = vpack.c.b16 %v714, %v711
  %v895 = vpack.c.b16 %v718, %v715
  %v896 = vpack.c.b16 %v719, %v716
  %v897 = vpack.c.b16 %v720, %v717
  %v898 = vpack.c.b16 %v724, %v721
  %v899 = vpack.c.b16 %v725, %v722
  %v900 = vpack.c.b16 %v726, %v723
  %v901 = vpack.c.b16 %v730, %v727
  %v902 = vpack.c.b16 %v731, %v728
  %v903 = vpack.c.b16 %v732, %v729
  %v904 = vpack.c.b16 %v736, %v733
  %v905 = vpack.c.b16 %v737, %v734
  %v906 = vpack.c.b16 %v738, %v735
  %v907 = vpack.c.b16 %v742, %v739
  %v908 = vpack.c.b16 %v743, %v740
  %v909 = vpack.c.b16 %v744, %v741
  %v910 = vpack.c.b16 %v748, %v745
  %v911 = vpack.c.b16 %v749, %v746
  %v912 = vpack.c.b16 %v750, %v747
  %v913 = vpack.c.b16 %v754, %v751
  %v914 = vpack.c.b16 %v755, %v752
  %v915 = vpack.c.b16 %v756, %v753
  %v916 = vpack.c.b16 %v760, %v757
  %v917 = vpack.c.b16 %v761, %v758
  %v918 = vpack.c.b16 %v762, %v759
  %v919 = vpack.c.b16 %v766, %v763
  %v920 = vpack.c.b16 %v767, %v764
  %v921 = vpack.c.b16 %v768, %v765
  %v922 = vpack.c.b16 %v772, %v769
  %v923 = vpack.c.b16 %v773, %v770
  %v924 = vpack.c.b16 %v774, %v771
  %v925 = vpack.c.b16 %v778, %v775
  %v926 = vpack.c.b16 %v779, %v776
  %v927 = vpack.c.b16 %v780, %v777
  %v928 = vpack.c.b16 %v784, %v781
  %v929 = vpack.c.b16 %v785, %v782
  %v930 = vpack.c.b16 %v786, %v783
  %v931 = vpack.c.b16 %v790, %v787
  %v932 = vpack.c.b16 %v791, %v788
  %v933 = vpack.c.b16 %v792, %v789
  %v934 = vpack.c.b16 %v796, %v793
  %v935 = vpack.c.b16 %v797, %v794
  %v936 = vpack.c.b16 %v798, %v795
  %v937 = vpack.c.b16 %v802, %v799
  %v938 = vpack.c.b16 %v803, %v800
  %v939 = vpack.c.b16 %v804, %v801
  %v940 = vpack.c.b16 %v808, %v805
  %v941 = vpack.c.b16 %v809, %v806
  %v942 = vpack.c.b16 %v810, %v807
  %v943 = vpack.c.b16 %v814, %v811
  %v944 = vpack.c.b16 %v815, %v812
  %v945 = vpack.c.b16 %v816, %v813
  %v946 = vpack.c.b16 %v820, %v817
  %v947 = vpack.c.b16 %v821, %v818
  %v948 = vpack.c.b16 %v822, %v819
  %v949 = vpack.c.b16 %v826, %v823
  %v950 = vpack.c.b16 %v827, %v824
  %v951 = vpack.c.b16 %v828, %v825
  %v952 = vpack.c.b16 %v832, %v829
  %v953 = vpack.c.b16 %v833, %v830
  %v954 = vpack.c.b16 %v834, %v831
  %v955 = vpack.c.b16 %v838, %v835
  %v956 = vpack.c.b16 %v839, %v836
  %v957 = vpack.c.b16 %v840, %v837
  %v958 = vpack.c.b16 %v844, %v841
  %v959 = vpack.c.b16 %v845, %v842
  %v960 = vpack.c.b16 %v846, %v843
  %v961 = vpack.c.b16 %v850, %v847
  %v962 = vpack.c.b16 %v851, %v848
  %v963 = vpack.c.b16 %v852, %v849
  %v964 = vpack.c.b16 %v856, %v853
  %v965 = vpack.c.b16 %v857, %v854
  %v966 = vpack.c.b16 %v858, %v855
  %v967 = vpack.c.b16 %v862, %v859
  %v968 = vpack.c.b16 %v863, %v860
  %v969 = vpack.c.b16 %v864, %v861
  %v970 = vpack.c.b16 %v868, %v865
  %v971 = vpack.c.b16 %v869, %v866
  %v972 = vpack.c.b16 %v870, %v867
  %v973 = vpack.c.b16 %v874, %v871
  %v974 = vpack.c.b16 %v875, %v872
  %v975 = vpack.c.b16 %v876, %v873
  %v976 = vpack.c.b16 %v880, %v877
  %v977 = vpack.c.b16 %v881, %v878
  %v978 = vpack.c.b16 %v882, %v879
  %v979 = vpack.c.b16 %v883, %v883
  %v980 = vpack.c.b16 %v884, %v884
  %v981 = vpack.c.b16 %v885, %v885
  %vm1075 = vcmask 949248
  %v1077 = vsel %vm1075, %v427, 0
  %vm1079 = vcmask 1041408
  %v1081 = vsel %vm1079, %v979, 0
  %v1084 = vsel %vm1079, %v980, 0
  %v1087 = vsel %vm1079, %v981, 0
  %1089 = vmatprep.subr.bf16.mxu0 %v908
  %1090 = vmatpush1.bf16.msra.mxu0 %v907
  %1091 = vmatprep.subr.bf16.mxu0 %v905
  %1092 = vmatpush1.bf16.msra.mxu0 %v904
  %1093 = vmatprep.subr.bf16.mxu0 %v902
  %1094 = vmatpush1.bf16.msra.mxu0 %v901
  %1095 = vmatprep.subr.bf16.mxu0 %v899
  %1096 = vmatpush1.bf16.msra.mxu0 %v898
  %1097 = vmatprep.subr.bf16.mxu0 %v896
  %1098 = vmatpush1.bf16.msra.mxu0 %v895
  %1099 = vmatprep.subr.bf16.mxu0 %v893
  %1100 = vmatpush1.bf16.msra.mxu0 %v892
  %1101 = vmatprep.subr.bf16.mxu0 %v890
  %1102 = vmatpush1.bf16.msra.mxu0 %v889
  %1103 = vmatprep.subr.bf16.mxu0 %v887
  %1104 = vmatpush1.bf16.msra.mxu0 %v886
  %1105 = vmatprep.subr.bf16.mxu0 %v932
  %1106 = vmatpush2.bf16.msra.mxu0 %v931
  %1107 = vmatprep.subr.bf16.mxu0 %v929
  %1108 = vmatpush2.bf16.msra.mxu0 %v928
  %1109 = vmatprep.subr.bf16.mxu0 %v926
  %1110 = vmatpush2.bf16.msra.mxu0 %v925
  %1111 = vmatprep.subr.bf16.mxu0 %v923
  %1112 = vmatpush2.bf16.msra.mxu0 %v922
  %1113 = vmatprep.subr.bf16.mxu0 %v920
  %1114 = vmatpush2.bf16.msra.mxu0 %v919
  %1115 = vmatprep.subr.bf16.mxu0 %v917
  %1116 = vmatpush2.bf16.msra.mxu0 %v916
  %1117 = vmatprep.subr.bf16.mxu0 %v914
  %1118 = vmatpush2.bf16.msra.mxu0 %v913
  %1119 = vmatprep.subr.bf16.mxu0 %v911
  %1120 = vmatpush2.bf16.msra.mxu0 %v910
  %1121 = vmatprep.mubr.bf16.mxu0 %v425
  %1122 = vmatmul.mubr.bf16.gmra.mxu0 %v424
  %v1123 = vpop.f32.mrf.mxu0
  %v1124 = vadd.f32 %v559, %v1123
  %v1125 = vpop.f32.mrf.mxu0
  %v1126 = vadd.f32 %v563, %v1125
  %v1127 = vpop.f32.mrf.mxu0
  %v1128 = vpop.f32.mrf.mxu0
  %1129 = vdwg.mxu0
  %1130 = vmatprep.subr.bf16.mxu0 %v956
  %1131 = vmatpush1.bf16.msra.mxu0 %v955
  %1132 = vmatprep.subr.bf16.mxu0 %v953
  %1133 = vmatpush1.bf16.msra.mxu0 %v952
  %1134 = vmatprep.subr.bf16.mxu0 %v950
  %1135 = vmatpush1.bf16.msra.mxu0 %v949
  %1136 = vmatprep.subr.bf16.mxu0 %v947
  %1137 = vmatpush1.bf16.msra.mxu0 %v946
  %1138 = vmatprep.subr.bf16.mxu0 %v944
  %1139 = vmatpush1.bf16.msra.mxu0 %v943
  %1140 = vmatprep.subr.bf16.mxu0 %v941
  %1141 = vmatpush1.bf16.msra.mxu0 %v940
  %1142 = vmatprep.subr.bf16.mxu0 %v938
  %1143 = vmatpush1.bf16.msra.mxu0 %v937
  %1144 = vmatprep.subr.bf16.mxu0 %v935
  %1145 = vmatpush1.bf16.msra.mxu0 %v934
  %1146 = vmatprep.subr.bf16.mxu0 %v1084
  %1147 = vmatpush2.bf16.msra.mxu0 %v1081
  %1148 = vmatprep.subr.bf16.mxu0 %v977
  %1149 = vmatpush2.bf16.msra.mxu0 %v976
  %1150 = vmatprep.subr.bf16.mxu0 %v974
  %1151 = vmatpush2.bf16.msra.mxu0 %v973
  %1152 = vmatprep.subr.bf16.mxu0 %v971
  %1153 = vmatpush2.bf16.msra.mxu0 %v970
  %1154 = vmatprep.subr.bf16.mxu0 %v968
  %1155 = vmatpush2.bf16.msra.mxu0 %v967
  %1156 = vmatprep.subr.bf16.mxu0 %v965
  %1157 = vmatpush2.bf16.msra.mxu0 %v964
  %1158 = vmatprep.subr.bf16.mxu0 %v962
  %1159 = vmatpush2.bf16.msra.mxu0 %v961
  %1160 = vmatprep.subr.bf16.mxu0 %v959
  %1161 = vmatpush2.bf16.msra.mxu0 %v958
  %1162 = vmatprep.mubr.bf16.mxu0 %v1077
  %1163 = vmatmul.mubr.bf16.gmra.mxu0 %v426
  %v1164 = vpop.f32.mrf.mxu0
  %v1165 = vadd.f32 %v1124, %v1164
  %v1166 = vpop.f32.mrf.mxu0
  %v1167 = vadd.f32 %v1126, %v1166
  %v1168 = vpop.f32.mrf.mxu0
  %v1169 = vpop.f32.mrf.mxu0
  %1170 = vdwg.mxu0
  %1171 = vmatprep.subr.bf16.mxu0 0
  %1172 = vmatpush1.bf16.msra.mxu0 %v909
  %1173 = vmatprep.subr.bf16.mxu0 0
  %1174 = vmatpush1.bf16.msra.mxu0 %v906
  %1175 = vmatprep.subr.bf16.mxu0 0
  %1176 = vmatpush1.bf16.msra.mxu0 %v903
  %1177 = vmatprep.subr.bf16.mxu0 0
  %1178 = vmatpush1.bf16.msra.mxu0 %v900
  %1179 = vmatprep.subr.bf16.mxu0 0
  %1180 = vmatpush1.bf16.msra.mxu0 %v897
  %1181 = vmatprep.subr.bf16.mxu0 0
  %1182 = vmatpush1.bf16.msra.mxu0 %v894
  %1183 = vmatprep.subr.bf16.mxu0 0
  %1184 = vmatpush1.bf16.msra.mxu0 %v891
  %1185 = vmatprep.subr.bf16.mxu0 0
  %1186 = vmatpush1.bf16.msra.mxu0 %v888
  %1187 = vmatprep.subr.bf16.mxu0 0
  %1188 = vmatpush2.bf16.msra.mxu0 %v933
  %1189 = vmatprep.subr.bf16.mxu0 0
  %1190 = vmatpush2.bf16.msra.mxu0 %v930
  %1191 = vmatprep.subr.bf16.mxu0 0
  %1192 = vmatpush2.bf16.msra.mxu0 %v927
  %1193 = vmatprep.subr.bf16.mxu0 0
  %1194 = vmatpush2.bf16.msra.mxu0 %v924
  %1195 = vmatprep.subr.bf16.mxu0 0
  %1196 = vmatpush2.bf16.msra.mxu0 %v921
  %1197 = vmatprep.subr.bf16.mxu0 0
  %1198 = vmatpush2.bf16.msra.mxu0 %v918
  %1199 = vmatprep.subr.bf16.mxu0 0
  %1200 = vmatpush2.bf16.msra.mxu0 %v915
  %1201 = vmatprep.subr.bf16.mxu0 0
  %1202 = vmatpush2.bf16.msra.mxu0 %v912
  %1203 = vmatprep.mubr.bf16.mxu0 %v425
  %1204 = vmatmul.mubr.bf16.gmra.mxu0 %v424
  %v1205 = vpop.f32.mrf.mxu0
  %v1206 = vadd.f32 %v567, %v1205
  %v1207 = vpop.f32.mrf.mxu0
  %v1208 = vpop.f32.mrf.mxu0
  %v1209 = vpop.f32.mrf.mxu0
  %1210 = vdwg.mxu0
  %1211 = vmatprep.subr.bf16.mxu0 0
  %1212 = vmatpush1.bf16.msra.mxu0 %v957
  %1213 = vmatprep.subr.bf16.mxu0 0
  %1214 = vmatpush1.bf16.msra.mxu0 %v954
  %1215 = vmatprep.subr.bf16.mxu0 0
  %1216 = vmatpush1.bf16.msra.mxu0 %v951
  %1217 = vmatprep.subr.bf16.mxu0 0
  %1218 = vmatpush1.bf16.msra.mxu0 %v948
  %1219 = vmatprep.subr.bf16.mxu0 0
  %1220 = vmatpush1.bf16.msra.mxu0 %v945
  %1221 = vmatprep.subr.bf16.mxu0 0
  %1222 = vmatpush1.bf16.msra.mxu0 %v942
  %1223 = vmatprep.subr.bf16.mxu0 0
  %1224 = vmatpush1.bf16.msra.mxu0 %v939
  %1225 = vmatprep.subr.bf16.mxu0 0
  %1226 = vmatpush1.bf16.msra.mxu0 %v936
  %1227 = vmatprep.subr.bf16.mxu0 0
  %1228 = vmatpush2.bf16.msra.mxu0 %v1087
  %1229 = vmatprep.subr.bf16.mxu0 0
  %1230 = vmatpush2.bf16.msra.mxu0 %v978
  %1231 = vmatprep.subr.bf16.mxu0 0
  %1232 = vmatpush2.bf16.msra.mxu0 %v975
  %1233 = vmatprep.subr.bf16.mxu0 0
  %1234 = vmatpush2.bf16.msra.mxu0 %v972
  %1235 = vmatprep.subr.bf16.mxu0 0
  %1236 = vmatpush2.bf16.msra.mxu0 %v969
  %1237 = vmatprep.subr.bf16.mxu0 0
  %1238 = vmatpush2.bf16.msra.mxu0 %v966
  %1239 = vmatprep.subr.bf16.mxu0 0
  %1240 = vmatpush2.bf16.msra.mxu0 %v963
  %1241 = vmatprep.subr.bf16.mxu0 0
  %1242 = vmatpush2.bf16.msra.mxu0 %v960
  %1243 = vmatprep.mubr.bf16.mxu0 %v1077
  %1244 = vmatmul.mubr.bf16.gmra.mxu0 %v426
  %v1245 = vpop.f32.mrf.mxu0
  %v1246 = vadd.f32 %v1206, %v1245
  %v1247 = vpop.f32.mrf.mxu0
  %v1248 = vpop.f32.mrf.mxu0
  %v1249 = vpop.f32.mrf.mxu0
  %1250 = vdwg.mxu0
  %v1251 = vmax.f32 %v1165, 0.0
  %v1252 = vmax.f32 %v1167, 0.0
  %v1253 = vmax.f32 %v1246, 0.0
  %v1254 = vpack.c.bf16 %v1251, %v1251
  %v1255 = vpack.c.bf16 %v1252, %v1252
  %v1256 = vpack.c.bf16 %v1253, %v1253
  %v1257 = vld [vmem:[%s5] sm:$0xff]
  %v1258 = vld [vmem:[%s5 + $0x8] sm:$0xff]
  %v1259 = vld [vmem:[%s5 + $0x10] sm:$0xff]
  %v1260 = vld [vmem:[%s5 + $0x18] sm:$0xff]
  %v1261 = vld [vmem:[%s5 + $0x20] sm:$0xff]
  %v1262 = vld [vmem:[%s5 + $0x28] sm:$0xff]
  %v1263 = vld [vmem:[%s5 + $0x30] sm:$0xff]
  %v1264 = vld [vmem:[%s5 + $0x38] sm:$0xff]
  %v1265 = vld [vmem:[%s5 + $0x40] sm:$0xff]
  %v1266 = vld [vmem:[%s5 + $0x48] sm:$0xff]
  %v1267 = vld [vmem:[%s5 + $0x50] sm:$0xff]
  %v1268 = vld [vmem:[%s5 + $0x58] sm:$0xff]
  %v1269 = vld [vmem:[%s5 + $0x60] sm:$0xff]
  %v1270 = vld [vmem:[%s5 + $0x68] sm:$0xff]
  %v1271 = vld [vmem:[%s5 + $0x70] sm:$0xff]
  %v1272 = vld [vmem:[%s5 + $0x78] sm:$0xff]
  %v1273 = vld [vmem:[%s5 + $0x80] sm:$0xff]
  %v1274 = vld [vmem:[%s5 + $0x88] sm:$0xff]
  %v1275 = vld [vmem:[%s5 + $0x90] sm:$0xff]
  %v1276 = vld [vmem:[%s5 + $0x98] sm:$0xff]
  %v1277 = vld [vmem:[%s5 + $0xa0] sm:$0xff]
  %v1278 = vld [vmem:[%s5 + $0xa8] sm:$0xff]
  %v1279 = vld [vmem:[%s5 + $0xb0] sm:$0xff]
  %v1280 = vld [vmem:[%s5 + $0xb8] sm:$0xff]
  %v1281 = vld [vmem:[%s5 + $0xc0] sm:$0xff]
  %v1282 = vld [vmem:[%s5 + $0xc8] sm:$0xff]
  %v1283 = vld [vmem:[%s5 + $0xd0] sm:$0xff]
  %v1284 = vld [vmem:[%s5 + $0xd8] sm:$0xff]
  %v1285 = vld [vmem:[%s5 + $0xe0] sm:$0xff]
  %v1286 = vld [vmem:[%s5 + $0xe8] sm:$0xff]
  %v1287 = vld [vmem:[%s5 + $0xf0] sm:$0xff]
  %v1288 = vld [vmem:[%s5 + $0xf8] sm:$0xff]
  %v1289 = vld [vmem:[%s5 + $0x100] sm:$0xff]
  %v1290 = vld [vmem:[%s5 + $0x108] sm:$0xff]
  %v1291 = vld [vmem:[%s5 + $0x110] sm:$0xff]
  %v1292 = vld [vmem:[%s5 + $0x118] sm:$0xff]
  %v1293 = vld [vmem:[%s5 + $0x120] sm:$0xff]
  %v1294 = vld [vmem:[%s5 + $0x128] sm:$0xff]
  %v1295 = vld [vmem:[%s5 + $0x130] sm:$0xff]
  %v1296 = vld [vmem:[%s5 + $0x138] sm:$0xff]
  %v1297 = vld [vmem:[%s5 + $0x140] sm:$0xff]
  %v1298 = vld [vmem:[%s5 + $0x148] sm:$0xff]
  %v1299 = vld [vmem:[%s5 + $0x150] sm:$0xff]
  %v1300 = vld [vmem:[%s5 + $0x158] sm:$0xff]
  %v1301 = vld [vmem:[%s5 + $0x160] sm:$0xff]
  %v1302 = vld [vmem:[%s5 + $0x168] sm:$0xff]
  %v1303 = vld [vmem:[%s5 + $0x170] sm:$0xff]
  %v1304 = vld [vmem:[%s5 + $0x178] sm:$0xff]
  %v1305 = vld [vmem:[%s5 + $0x180] sm:$0xff]
  %v1306 = vld [vmem:[%s5 + $0x188] sm:$0xff]
  %v1307 = vld [vmem:[%s5 + $0x190] sm:$0xff]
  %v1308 = vld [vmem:[%s5 + $0x198] sm:$0xff]
  %v1309 = vld [vmem:[%s5 + $0x1a0] sm:$0xff]
  %v1310 = vld [vmem:[%s5 + $0x1a8] sm:$0xff]
  %v1311 = vld [vmem:[%s5 + $0x1b0] sm:$0xff]
  %v1312 = vld [vmem:[%s5 + $0x1b8] sm:$0xff]
  %v1313 = vld [vmem:[%s5 + $0x1c0] sm:$0xff]
  %v1314 = vld [vmem:[%s5 + $0x1c8] sm:$0xff]
  %v1315 = vld [vmem:[%s5 + $0x1d0] sm:$0xff]
  %v1316 = vld [vmem:[%s5 + $0x1d8] sm:$0xff]
  %v1317 = vld [vmem:[%s5 + $0x1e0] sm:$0xff]
  %v1318 = vld [vmem:[%s5 + $0x1e8] sm:$0xff]
  %v1319 = vld [vmem:[%s5 + $0x1f0] sm:$0xff]
  %v1320 = vld [vmem:[%s5 + $0x1f8] sm:$0xff]
  %v1321 = vld [vmem:[%s5 + $0x200] sm:$0xff]
  %v1322 = vld [vmem:[%s5 + $0x208] sm:$0xff]
  %v1323 = vld [vmem:[%s5 + $0x210] sm:$0xff]
  %v1324 = vld [vmem:[%s5 + $0x218] sm:$0xff]
  %v1325 = vld [vmem:[%s5 + $0x220] sm:$0xff]
  %v1326 = vld [vmem:[%s5 + $0x228] sm:$0xff]
  %v1327 = vld [vmem:[%s5 + $0x230] sm:$0xff]
  %v1328 = vld [vmem:[%s5 + $0x238] sm:$0xff]
  %v1329 = vld [vmem:[%s5 + $0x240] sm:$0xff]
  %v1330 = vld [vmem:[%s5 + $0x248] sm:$0xff]
  %v1331 = vld [vmem:[%s5 + $0x250] sm:$0x33]
  %v1332 = vld [vmem:[%s5 + $0x258] sm:$0x33]
  %v1333 = vld [vmem:[%s6] sm:$0xf]
  %v1335 = vlaneseq
  %v1336 = vshrl.u32 %v1335, 7
  %v1337 = vsub.s32 0, %v1336
  %v1338 = vrot.slane %v1333, %v1337
  %v1339 = vlaneseq
  %v1340 = vshrl.u32 %v1339, 7
  %v1341 = vsub.s32 1, %v1340
  %v1342 = vrot.slane %v1333, %v1341
  %v1343 = vlaneseq
  %v1344 = vshrl.u32 %v1343, 7
  %v1345 = vsub.s32 2, %v1344
  %v1346 = vrot.slane %v1333, %v1345
  %v1347 = vlaneseq
  %v1348 = vshrl.u32 %v1347, 7
  %v1349 = vsub.s32 3, %v1348
  %v1350 = vrot.slane %v1333, %v1349
  %v1431 = vunpack.c.l.b16 %v1257
  %v1432 = vunpack.c.h.b16 %v1257
  %v1433 = vunpack.c.l.b16 %v1258
  %v1434 = vunpack.c.h.b16 %v1258
  %v1435 = vunpack.c.l.b16 %v1259
  %v1436 = vunpack.c.h.b16 %v1259
  %v1437 = vunpack.c.l.b16 %v1260
  %v1438 = vunpack.c.h.b16 %v1260
  %v1439 = vunpack.c.l.b16 %v1261
  %v1440 = vunpack.c.h.b16 %v1261
  %v1441 = vunpack.c.l.b16 %v1262
  %v1442 = vunpack.c.h.b16 %v1262
  %v1443 = vunpack.c.l.b16 %v1263
  %v1444 = vunpack.c.h.b16 %v1263
  %v1445 = vunpack.c.l.b16 %v1264
  %v1446 = vunpack.c.h.b16 %v1264
  %v1447 = vunpack.c.l.b16 %v1265
  %v1448 = vunpack.c.h.b16 %v1265
  %v1449 = vunpack.c.l.b16 %v1266
  %v1450 = vunpack.c.h.b16 %v1266
  %v1451 = vunpack.c.l.b16 %v1267
  %v1452 = vunpack.c.h.b16 %v1267
  %v1453 = vunpack.c.l.b16 %v1268
  %v1454 = vunpack.c.h.b16 %v1268
  %v1455 = vunpack.c.l.b16 %v1269
  %v1456 = vunpack.c.h.b16 %v1269
  %v1457 = vunpack.c.l.b16 %v1270
  %v1458 = vunpack.c.h.b16 %v1270
  %v1459 = vunpack.c.l.b16 %v1271
  %v1460 = vunpack.c.h.b16 %v1271
  %v1461 = vunpack.c.l.b16 %v1272
  %v1462 = vunpack.c.h.b16 %v1272
  %v1463 = vunpack.c.l.b16 %v1273
  %v1464 = vunpack.c.h.b16 %v1273
  %v1465 = vunpack.c.l.b16 %v1274
  %v1466 = vunpack.c.h.b16 %v1274
  %v1467 = vunpack.c.l.b16 %v1275
  %v1468 = vunpack.c.h.b16 %v1275
  %v1469 = vunpack.c.l.b16 %v1276
  %v1470 = vunpack.c.h.b16 %v1276
  %v1471 = vunpack.c.l.b16 %v1277
  %v1472 = vunpack.c.h.b16 %v1277
  %v1473 = vunpack.c.l.b16 %v1278
  %v1474 = vunpack.c.h.b16 %v1278
  %v1475 = vunpack.c.l.b16 %v1279
  %v1476 = vunpack.c.h.b16 %v1279
  %v1477 = vunpack.c.l.b16 %v1280
  %v1478 = vunpack.c.h.b16 %v1280
  %v1479 = vunpack.c.l.b16 %v1281
  %v1480 = vunpack.c.h.b16 %v1281
  %v1481 = vunpack.c.l.b16 %v1282
  %v1482 = vunpack.c.h.b16 %v1282
  %v1483 = vunpack.c.l.b16 %v1283
  %v1484 = vunpack.c.h.b16 %v1283
  %v1485 = vunpack.c.l.b16 %v1284
  %v1486 = vunpack.c.h.b16 %v1284
  %v1487 = vunpack.c.l.b16 %v1285
  %v1488 = vunpack.c.h.b16 %v1285
  %v1489 = vunpack.c.l.b16 %v1286
  %v1490 = vunpack.c.h.b16 %v1286
  %v1491 = vunpack.c.l.b16 %v1287
  %v1492 = vunpack.c.h.b16 %v1287
  %v1493 = vunpack.c.l.b16 %v1288
  %v1494 = vunpack.c.h.b16 %v1288
  %v1495 = vunpack.c.l.b16 %v1289
  %v1496 = vunpack.c.h.b16 %v1289
  %v1497 = vunpack.c.l.b16 %v1290
  %v1498 = vunpack.c.h.b16 %v1290
  %v1499 = vunpack.c.l.b16 %v1291
  %v1500 = vunpack.c.h.b16 %v1291
  %v1501 = vunpack.c.l.b16 %v1292
  %v1502 = vunpack.c.h.b16 %v1292
  %v1503 = vunpack.c.l.b16 %v1293
  %v1504 = vunpack.c.h.b16 %v1293
  %v1505 = vunpack.c.l.b16 %v1294
  %v1506 = vunpack.c.h.b16 %v1294
  %v1507 = vunpack.c.l.b16 %v1295
  %v1508 = vunpack.c.h.b16 %v1295
  %v1509 = vunpack.c.l.b16 %v1296
  %v1510 = vunpack.c.h.b16 %v1296
  %v1511 = vunpack.c.l.b16 %v1297
  %v1512 = vunpack.c.h.b16 %v1297
  %v1513 = vunpack.c.l.b16 %v1298
  %v1514 = vunpack.c.h.b16 %v1298
  %v1515 = vunpack.c.l.b16 %v1299
  %v1516 = vunpack.c.h.b16 %v1299
  %v1517 = vunpack.c.l.b16 %v1300
  %v1518 = vunpack.c.h.b16 %v1300
  %v1519 = vunpack.c.l.b16 %v1301
  %v1520 = vunpack.c.h.b16 %v1301
  %v1521 = vunpack.c.l.b16 %v1302
  %v1522 = vunpack.c.h.b16 %v1302
  %v1523 = vunpack.c.l.b16 %v1303
  %v1524 = vunpack.c.h.b16 %v1303
  %v1525 = vunpack.c.l.b16 %v1304
  %v1526 = vunpack.c.h.b16 %v1304
  %v1527 = vunpack.c.l.b16 %v1305
  %v1528 = vunpack.c.h.b16 %v1305
  %v1529 = vunpack.c.l.b16 %v1306
  %v1530 = vunpack.c.h.b16 %v1306
  %v1531 = vunpack.c.l.b16 %v1307
  %v1532 = vunpack.c.h.b16 %v1307
  %v1533 = vunpack.c.l.b16 %v1308
  %v1534 = vunpack.c.h.b16 %v1308
  %v1535 = vunpack.c.l.b16 %v1309
  %v1536 = vunpack.c.h.b16 %v1309
  %v1537 = vunpack.c.l.b16 %v1310
  %v1538 = vunpack.c.h.b16 %v1310
  %v1539 = vunpack.c.l.b16 %v1311
  %v1540 = vunpack.c.h.b16 %v1311
  %v1541 = vunpack.c.l.b16 %v1312
  %v1542 = vunpack.c.h.b16 %v1312
  %v1543 = vunpack.c.l.b16 %v1313
  %v1544 = vunpack.c.h.b16 %v1313
  %v1545 = vunpack.c.l.b16 %v1314
  %v1546 = vunpack.c.h.b16 %v1314
  %v1547 = vunpack.c.l.b16 %v1315
  %v1548 = vunpack.c.h.b16 %v1315
  %v1549 = vunpack.c.l.b16 %v1316
  %v1550 = vunpack.c.h.b16 %v1316
  %v1551 = vunpack.c.l.b16 %v1317
  %v1552 = vunpack.c.h.b16 %v1317
  %v1553 = vunpack.c.l.b16 %v1318
  %v1554 = vunpack.c.h.b16 %v1318
  %v1555 = vunpack.c.l.b16 %v1319
  %v1556 = vunpack.c.h.b16 %v1319
  %v1557 = vunpack.c.l.b16 %v1320
  %v1558 = vunpack.c.h.b16 %v1320
  %v1559 = vunpack.c.l.b16 %v1321
  %v1560 = vunpack.c.h.b16 %v1321
  %v1561 = vunpack.c.l.b16 %v1322
  %v1562 = vunpack.c.h.b16 %v1322
  %v1563 = vunpack.c.l.b16 %v1323
  %v1564 = vunpack.c.h.b16 %v1323
  %v1565 = vunpack.c.l.b16 %v1324
  %v1566 = vunpack.c.h.b16 %v1324
  %v1567 = vunpack.c.l.b16 %v1325
  %v1568 = vunpack.c.h.b16 %v1325
  %v1569 = vunpack.c.l.b16 %v1326
  %v1570 = vunpack.c.h.b16 %v1326
  %v1571 = vunpack.c.l.b16 %v1327
  %v1572 = vunpack.c.h.b16 %v1327
  %v1573 = vunpack.c.l.b16 %v1328
  %v1574 = vunpack.c.h.b16 %v1328
  %v1575 = vunpack.c.l.b16 %v1329
  %v1576 = vunpack.c.h.b16 %v1329
  %v1577 = vunpack.c.l.b16 %v1330
  %v1578 = vunpack.c.h.b16 %v1330
  %v1579 = vunpack.c.l.b16 %v1331
  %v1580 = vunpack.c.h.b16 %v1331
  %v1581 = vunpack.c.l.b16 %v1332
  %v1582 = vunpack.c.h.b16 %v1332
  %v1583 = vpack.c.b16 %v1435, %v1431
  %v1584 = vpack.c.b16 %v1436, %v1432
  %v1585 = vpack.c.b16 %v1437, %v1433
  %v1586 = vpack.c.b16 %v1438, %v1434
  %v1587 = vpack.c.b16 %v1443, %v1439
  %v1588 = vpack.c.b16 %v1444, %v1440
  %v1589 = vpack.c.b16 %v1445, %v1441
  %v1590 = vpack.c.b16 %v1446, %v1442
  %v1591 = vpack.c.b16 %v1451, %v1447
  %v1592 = vpack.c.b16 %v1452, %v1448
  %v1593 = vpack.c.b16 %v1453, %v1449
  %v1594 = vpack.c.b16 %v1454, %v1450
  %v1595 = vpack.c.b16 %v1459, %v1455
  %v1596 = vpack.c.b16 %v1460, %v1456
  %v1597 = vpack.c.b16 %v1461, %v1457
  %v1598 = vpack.c.b16 %v1462, %v1458
  %v1599 = vpack.c.b16 %v1467, %v1463
  %v1600 = vpack.c.b16 %v1468, %v1464
  %v1601 = vpack.c.b16 %v1469, %v1465
  %v1602 = vpack.c.b16 %v1470, %v1466
  %v1603 = vpack.c.b16 %v1475, %v1471
  %v1604 = vpack.c.b16 %v1476, %v1472
  %v1605 = vpack.c.b16 %v1477, %v1473
  %v1606 = vpack.c.b16 %v1478, %v1474
  %v1607 = vpack.c.b16 %v1483, %v1479
  %v1608 = vpack.c.b16 %v1484, %v1480
  %v1609 = vpack.c.b16 %v1485, %v1481
  %v1610 = vpack.c.b16 %v1486, %v1482
  %v1611 = vpack.c.b16 %v1491, %v1487
  %v1612 = vpack.c.b16 %v1492, %v1488
  %v1613 = vpack.c.b16 %v1493, %v1489
  %v1614 = vpack.c.b16 %v1494, %v1490
  %v1615 = vpack.c.b16 %v1499, %v1495
  %v1616 = vpack.c.b16 %v1500, %v1496
  %v1617 = vpack.c.b16 %v1501, %v1497
  %v1618 = vpack.c.b16 %v1502, %v1498
  %v1619 = vpack.c.b16 %v1507, %v1503
  %v1620 = vpack.c.b16 %v1508, %v1504
  %v1621 = vpack.c.b16 %v1509, %v1505
  %v1622 = vpack.c.b16 %v1510, %v1506
  %v1623 = vpack.c.b16 %v1515, %v1511
  %v1624 = vpack.c.b16 %v1516, %v1512
  %v1625 = vpack.c.b16 %v1517, %v1513
  %v1626 = vpack.c.b16 %v1518, %v1514
  %v1627 = vpack.c.b16 %v1523, %v1519
  %v1628 = vpack.c.b16 %v1524, %v1520
  %v1629 = vpack.c.b16 %v1525, %v1521
  %v1630 = vpack.c.b16 %v1526, %v1522
  %v1631 = vpack.c.b16 %v1531, %v1527
  %v1632 = vpack.c.b16 %v1532, %v1528
  %v1633 = vpack.c.b16 %v1533, %v1529
  %v1634 = vpack.c.b16 %v1534, %v1530
  %v1635 = vpack.c.b16 %v1539, %v1535
  %v1636 = vpack.c.b16 %v1540, %v1536
  %v1637 = vpack.c.b16 %v1541, %v1537
  %v1638 = vpack.c.b16 %v1542, %v1538
  %v1639 = vpack.c.b16 %v1547, %v1543
  %v1640 = vpack.c.b16 %v1548, %v1544
  %v1641 = vpack.c.b16 %v1549, %v1545
  %v1642 = vpack.c.b16 %v1550, %v1546
  %v1643 = vpack.c.b16 %v1555, %v1551
  %v1644 = vpack.c.b16 %v1556, %v1552
  %v1645 = vpack.c.b16 %v1557, %v1553
  %v1646 = vpack.c.b16 %v1558, %v1554
  %v1647 = vpack.c.b16 %v1563, %v1559
  %v1648 = vpack.c.b16 %v1564, %v1560
  %v1649 = vpack.c.b16 %v1565, %v1561
  %v1650 = vpack.c.b16 %v1566, %v1562
  %v1651 = vpack.c.b16 %v1571, %v1567
  %v1652 = vpack.c.b16 %v1572, %v1568
  %v1653 = vpack.c.b16 %v1573, %v1569
  %v1654 = vpack.c.b16 %v1574, %v1570
  %v1655 = vpack.c.b16 %v1579, %v1575
  %v1656 = vpack.c.b16 %v1580, %v1576
  %v1657 = vpack.c.b16 %v1581, %v1577
  %v1658 = vpack.c.b16 %v1582, %v1578
  %vm1731 = vcmask 359424
  %v1733 = vsel %vm1731, %v1256, 0
  %vm1735 = vcmask 1045504
  %v1737 = vsel %vm1735, %v1655, 0
  %v1740 = vsel %vm1735, %v1656, 0
  %v1743 = vsel %vm1735, %v1657, 0
  %v1746 = vsel %vm1735, %v1658, 0
  %1748 = vmatprep.subr.bf16.mxu0 %v1612
  %1749 = vmatpush1.bf16.msra.mxu0 %v1611
  %1750 = vmatprep.subr.bf16.mxu0 %v1608
  %1751 = vmatpush1.bf16.msra.mxu0 %v1607
  %1752 = vmatprep.subr.bf16.mxu0 %v1604
  %1753 = vmatpush1.bf16.msra.mxu0 %v1603
  %1754 = vmatprep.subr.bf16.mxu0 %v1600
  %1755 = vmatpush1.bf16.msra.mxu0 %v1599
  %1756 = vmatprep.subr.bf16.mxu0 %v1596
  %1757 = vmatpush1.bf16.msra.mxu0 %v1595
  %1758 = vmatprep.subr.bf16.mxu0 %v1592
  %1759 = vmatpush1.bf16.msra.mxu0 %v1591
  %1760 = vmatprep.subr.bf16.mxu0 %v1588
  %1761 = vmatpush1.bf16.msra.mxu0 %v1587
  %1762 = vmatprep.subr.bf16.mxu0 %v1584
  %1763 = vmatpush1.bf16.msra.mxu0 %v1583
  %1764 = vmatprep.subr.bf16.mxu0 %v1644
  %1765 = vmatpush2.bf16.msra.mxu0 %v1643
  %1766 = vmatprep.subr.bf16.mxu0 %v1640
  %1767 = vmatpush2.bf16.msra.mxu0 %v1639
  %1768 = vmatprep.subr.bf16.mxu0 %v1636
  %1769 = vmatpush2.bf16.msra.mxu0 %v1635
  %1770 = vmatprep.subr.bf16.mxu0 %v1632
  %1771 = vmatpush2.bf16.msra.mxu0 %v1631
  %1772 = vmatprep.subr.bf16.mxu0 %v1628
  %1773 = vmatpush2.bf16.msra.mxu0 %v1627
  %1774 = vmatprep.subr.bf16.mxu0 %v1624
  %1775 = vmatpush2.bf16.msra.mxu0 %v1623
  %1776 = vmatprep.subr.bf16.mxu0 %v1620
  %1777 = vmatpush2.bf16.msra.mxu0 %v1619
  %1778 = vmatprep.subr.bf16.mxu0 %v1616
  %1779 = vmatpush2.bf16.msra.mxu0 %v1615
  %1780 = vmatprep.mubr.bf16.mxu0 %v1255
  %1781 = vmatmul.mubr.bf16.gmra.mxu0 %v1254
  %v1782 = vpop.f32.mrf.mxu0
  %v1783 = vadd.f32 %v1338, %v1782
  %v1784 = vpop.f32.mrf.mxu0
  %v1785 = vadd.f32 %v1342, %v1784
  %v1786 = vpop.f32.mrf.mxu0
  %v1787 = vpop.f32.mrf.mxu0
  %1788 = vdwg.mxu0
  %1789 = vmatprep.subr.bf16.mxu0 0
  %1790 = vmatpush1.bf16.msra.mxu0 0
  %1791 = vmatprep.subr.bf16.mxu0 0
  %1792 = vmatpush1.bf16.msra.mxu0 0
  %1793 = vmatprep.subr.bf16.mxu0 0
  %1794 = vmatpush1.bf16.msra.mxu0 0
  %1795 = vmatprep.subr.bf16.mxu0 0
  %1796 = vmatpush1.bf16.msra.mxu0 0
  %1797 = vmatprep.subr.bf16.mxu0 0
  %1798 = vmatpush1.bf16.msra.mxu0 0
  %1799 = vmatprep.subr.bf16.mxu0 %v1740
  %1800 = vmatpush1.bf16.msra.mxu0 %v1737
  %1801 = vmatprep.subr.bf16.mxu0 %v1652
  %1802 = vmatpush1.bf16.msra.mxu0 %v1651
  %1803 = vmatprep.subr.bf16.mxu0 %v1648
  %1804 = vmatpush1.bf16.msra.mxu0 %v1647
  %1805 = vmatprep.subr.bf16.mxu0 0
  %1806 = vmatpush2.bf16.msra.mxu0 0
  %1807 = vmatprep.subr.bf16.mxu0 0
  %1808 = vmatpush2.bf16.msra.mxu0 0
  %1809 = vmatprep.subr.bf16.mxu0 0
  %1810 = vmatpush2.bf16.msra.mxu0 0
  %1811 = vmatprep.subr.bf16.mxu0 0
  %1812 = vmatpush2.bf16.msra.mxu0 0
  %1813 = vmatprep.subr.bf16.mxu0 0
  %1814 = vmatpush2.bf16.msra.mxu0 0
  %1815 = vmatprep.subr.bf16.mxu0 0
  %1816 = vmatpush2.bf16.msra.mxu0 0
  %1817 = vmatprep.subr.bf16.mxu0 0
  %1818 = vmatpush2.bf16.msra.mxu0 0
  %1819 = vmatprep.subr.bf16.mxu0 0
  %1820 = vmatpush2.bf16.msra.mxu0 0
  %1821 = vmatprep.mubr.bf16.mxu0 0
  %1822 = vmatmul.mubr.bf16.gmra.mxu0 %v1733
  %v1823 = vpop.f32.mrf.mxu0
  %v1824 = vadd.f32 %v1783, %v1823
  %v1825 = vpop.f32.mrf.mxu0
  %v1826 = vadd.f32 %v1785, %v1825
  %v1827 = vpop.f32.mrf.mxu0
  %v1828 = vpop.f32.mrf.mxu0
  %1829 = vdwg.mxu0
  %1830 = vmatprep.subr.bf16.mxu0 %v1614
  %1831 = vmatpush1.bf16.msra.mxu0 %v1613
  %1832 = vmatprep.subr.bf16.mxu0 %v1610
  %1833 = vmatpush1.bf16.msra.mxu0 %v1609
  %1834 = vmatprep.subr.bf16.mxu0 %v1606
  %1835 = vmatpush1.bf16.msra.mxu0 %v1605
  %1836 = vmatprep.subr.bf16.mxu0 %v1602
  %1837 = vmatpush1.bf16.msra.mxu0 %v1601
  %1838 = vmatprep.subr.bf16.mxu0 %v1598
  %1839 = vmatpush1.bf16.msra.mxu0 %v1597
  %1840 = vmatprep.subr.bf16.mxu0 %v1594
  %1841 = vmatpush1.bf16.msra.mxu0 %v1593
  %1842 = vmatprep.subr.bf16.mxu0 %v1590
  %1843 = vmatpush1.bf16.msra.mxu0 %v1589
  %1844 = vmatprep.subr.bf16.mxu0 %v1586
  %1845 = vmatpush1.bf16.msra.mxu0 %v1585
  %1846 = vmatprep.subr.bf16.mxu0 %v1646
  %1847 = vmatpush2.bf16.msra.mxu0 %v1645
  %1848 = vmatprep.subr.bf16.mxu0 %v1642
  %1849 = vmatpush2.bf16.msra.mxu0 %v1641
  %1850 = vmatprep.subr.bf16.mxu0 %v1638
  %1851 = vmatpush2.bf16.msra.mxu0 %v1637
  %1852 = vmatprep.subr.bf16.mxu0 %v1634
  %1853 = vmatpush2.bf16.msra.mxu0 %v1633
  %1854 = vmatprep.subr.bf16.mxu0 %v1630
  %1855 = vmatpush2.bf16.msra.mxu0 %v1629
  %1856 = vmatprep.subr.bf16.mxu0 %v1626
  %1857 = vmatpush2.bf16.msra.mxu0 %v1625
  %1858 = vmatprep.subr.bf16.mxu0 %v1622
  %1859 = vmatpush2.bf16.msra.mxu0 %v1621
  %1860 = vmatprep.subr.bf16.mxu0 %v1618
  %1861 = vmatpush2.bf16.msra.mxu0 %v1617
  %1862 = vmatprep.mubr.bf16.mxu0 %v1255
  %1863 = vmatmul.mubr.bf16.gmra.mxu0 %v1254
  %v1864 = vpop.f32.mrf.mxu0
  %v1865 = vadd.f32 %v1346, %v1864
  %v1866 = vpop.f32.mrf.mxu0
  %v1867 = vadd.f32 %v1350, %v1866
  %v1868 = vpop.f32.mrf.mxu0
  %v1869 = vpop.f32.mrf.mxu0
  %1870 = vdwg.mxu0
  %1871 = vmatprep.subr.bf16.mxu0 0
  %1872 = vmatpush1.bf16.msra.mxu0 0
  %1873 = vmatprep.subr.bf16.mxu0 0
  %1874 = vmatpush1.bf16.msra.mxu0 0
  %1875 = vmatprep.subr.bf16.mxu0 0
  %1876 = vmatpush1.bf16.msra.mxu0 0
  %1877 = vmatprep.subr.bf16.mxu0 0
  %1878 = vmatpush1.bf16.msra.mxu0 0
  %1879 = vmatprep.subr.bf16.mxu0 0
  %1880 = vmatpush1.bf16.msra.mxu0 0
  %1881 = vmatprep.subr.bf16.mxu0 %v1746
  %1882 = vmatpush1.bf16.msra.mxu0 %v1743
  %1883 = vmatprep.subr.bf16.mxu0 %v1654
  %1884 = vmatpush1.bf16.msra.mxu0 %v1653
  %1885 = vmatprep.subr.bf16.mxu0 %v1650
  %1886 = vmatpush1.bf16.msra.mxu0 %v1649
  %1887 = vmatprep.subr.bf16.mxu0 0
  %1888 = vmatpush2.bf16.msra.mxu0 0
  %1889 = vmatprep.subr.bf16.mxu0 0
  %1890 = vmatpush2.bf16.msra.mxu0 0
  %1891 = vmatprep.subr.bf16.mxu0 0
  %1892 = vmatpush2.bf16.msra.mxu0 0
  %1893 = vmatprep.subr.bf16.mxu0 0
  %1894 = vmatpush2.bf16.msra.mxu0 0
  %1895 = vmatprep.subr.bf16.mxu0 0
  %1896 = vmatpush2.bf16.msra.mxu0 0
  %1897 = vmatprep.subr.bf16.mxu0 0
  %1898 = vmatpush2.bf16.msra.mxu0 0
  %1899 = vmatprep.subr.bf16.mxu0 0
  %1900 = vmatpush2.bf16.msra.mxu0 0
  %1901 = vmatprep.subr.bf16.mxu0 0
  %1902 = vmatpush2.bf16.msra.mxu0 0
  %1903 = vmatprep.mubr.bf16.mxu0 0
  %1904 = vmatmul.mubr.bf16.gmra.mxu0 %v1733
  %v1905 = vpop.f32.mrf.mxu0
  %v1906 = vadd.f32 %v1865, %v1905
  %v1907 = vpop.f32.mrf.mxu0
  %v1908 = vadd.f32 %v1867, %v1907
  %v1909 = vpop.f32.mrf.mxu0
  %v1910 = vpop.f32.mrf.mxu0
  %1911 = vdwg.mxu0
  %v1912 = vmax.f32 %v1824, 0.0
  %v1913 = vmax.f32 %v1826, 0.0
  %v1914 = vmax.f32 %v1906, 0.0
  %v1915 = vmax.f32 %v1908, 0.0
  %v1916 = vmax.f32 %v1912, %v1913
  %v1917 = vmax.f32 %v1914, %v1915
  %v1918 = vmax.f32 %v1916, %v1917
  %v1919 = vpack.c.bf16 %v1918, %v1918
  %v1920 = vld [vmem:[%s7] sm:$0xf]
  %v1921 = vld [vmem:[%s7 + $0x4] sm:$0xf]
  %v1922 = vld [vmem:[%s7 + $0x8] sm:$0xf]
  %v1923 = vld [vmem:[%s7 + $0xc] sm:$0xf]
  %v1924 = vld [vmem:[%s7 + $0x10] sm:$0xf]
  %v1925 = vld [vmem:[%s7 + $0x14] sm:$0xf]
  %v1926 = vld [vmem:[%s7 + $0x18] sm:$0xf]
  %v1927 = vld [vmem:[%s7 + $0x1c] sm:$0xf]
  %v1928 = vld [vmem:[%s7 + $0x20] sm:$0x3]
  %v1929 = vld [vmem:[%s8] sm:$0x1]
  %v1931 = vlaneseq
  %v1932 = vshrl.u32 %v1931, 7
  %v1933 = vsub.s32 0, %v1932
  %v1934 = vrot.slane %v1929, %v1933
  %v1945 = vunpack.c.l.b16 %v1920
  %v1946 = vunpack.c.l.b16 %v1921
  %v1947 = vunpack.c.l.b16 %v1922
  %v1948 = vunpack.c.l.b16 %v1923
  %v1949 = vunpack.c.l.b16 %v1924
  %v1950 = vunpack.c.l.b16 %v1925
  %v1951 = vunpack.c.l.b16 %v1926
  %v1952 = vunpack.c.l.b16 %v1927
  %v1953 = vunpack.c.l.b16 %v1928
  %v1954 = vpack.c.b16 %v1946, %v1945
  %v1955 = vpack.c.b16 %v1948, %v1947
  %v1956 = vpack.c.b16 %v1950, %v1949
  %v1957 = vpack.c.b16 %v1952, %v1951
  %v1958 = vpack.c.b16 %v1953, %v1953
  %vm1963 = vcmask 547840
  %v1965 = vsel %vm1963, %v1919, 0
  %vm1967 = vcmask 1040384
  %v1968 = vsel %vm1967, 4294967295, 65535
  %v1969 = vsel %vm1079, %v1968, 0
  %v1971 = vand.u32 %v1958, %v1969
  %1973 = vmatprep.subr.bf16.mxu0 0
  %1974 = vmatpush1.bf16.msra.mxu0 0
  %1975 = vmatprep.subr.bf16.mxu0 0
  %1976 = vmatpush1.bf16.msra.mxu0 0
  %1977 = vmatprep.subr.bf16.mxu0 0
  %1978 = vmatpush1.bf16.msra.mxu0 0
  %1979 = vmatprep.subr.bf16.mxu0 0
  %1980 = vmatpush1.bf16.msra.mxu0 %v1971
  %1981 = vmatprep.subr.bf16.mxu0 0
  %1982 = vmatpush1.bf16.msra.mxu0 %v1957
  %1983 = vmatprep.subr.bf16.mxu0 0
  %1984 = vmatpush1.bf16.msra.mxu0 %v1956
  %1985 = vmatprep.subr.bf16.mxu0 0
  %1986 = vmatpush1.bf16.msra.mxu0 %v1955
  %1987 = vmatprep.subr.bf16.mxu0 0
  %1988 = vmatpush1.bf16.msra.mxu0 %v1954
  %1989 = vmatprep.subr.bf16.mxu0 0
  %1990 = vmatpush2.bf16.msra.mxu0 0
  %1991 = vmatprep.subr.bf16.mxu0 0
  %1992 = vmatpush2.bf16.msra.mxu0 0
  %1993 = vmatprep.subr.bf16.mxu0 0
  %1994 = vmatpush2.bf16.msra.mxu0 0
  %1995 = vmatprep.subr.bf16.mxu0 0
  %1996 = vmatpush2.bf16.msra.mxu0 0
  %1997 = vmatprep.subr.bf16.mxu0 0
  %1998 = vmatpush2.bf16.msra.mxu0 0
  %1999 = vmatprep.subr.bf16.mxu0 0
  %2000 = vmatpush2.bf16.msra.mxu0 0
  %2001 = vmatprep.subr.bf16.mxu0 0
  %2002 = vmatpush2.bf16.msra.mxu0 0
  %2003 = vmatprep.subr.bf16.mxu0 0
  %2004 = vmatpush2.bf16.msra.mxu0 0
  %2005 = vmatprep.mubr.bf16.mxu0 0
  %2006 = vmatmul.mubr.bf16.gmra.mxu0 %v1965
  %v2007 = vpop.f32.mrf.mxu0
  %v2008 = vadd.f32 %v1934, %v2007
  %v2009 = vpop.f32.mrf.mxu0
  %v2010 = vpop.f32.mrf.mxu0
  %v2011 = vpop.f32.mrf.mxu0
  %2012 = vdwg.mxu0
  %v2013 = vmax.f32 %v2008, 0.0
  %v2014 = vpack.c.bf16 %v2013, %v2013
  %v2015 = vld [vmem:[%s9] sm:$0xff]
  %v2016 = vld [vmem:[%s9 + $0x8] sm:$0xff]
  %v2017 = vld [vmem:[%s9 + $0x10] sm:$0xff]
  %v2018 = vld [vmem:[%s9 + $0x18] sm:$0xff]
  %v2019 = vld [vmem:[%s9 + $0x20] sm:$0xff]
  %v2020 = vld [vmem:[%s9 + $0x28] sm:$0xff]
  %v2021 = vld [vmem:[%s9 + $0x30] sm:$0xff]
  %v2022 = vld [vmem:[%s9 + $0x38] sm:$0xff]
  %v2023 = vld [vmem:[%s9 + $0x40] sm:$0xff]
  %v2024 = vld [vmem:[%s9 + $0x48] sm:$0xff]
  %v2025 = vld [vmem:[%s9 + $0x50] sm:$0xff]
  %v2026 = vld [vmem:[%s9 + $0x58] sm:$0xff]
  %v2027 = vld [vmem:[%s9 + $0x60] sm:$0xff]
  %v2028 = vld [vmem:[%s9 + $0x68] sm:$0xff]
  %v2029 = vld [vmem:[%s9 + $0x70] sm:$0xff]
  %v2030 = vld [vmem:[%s10] sm:$0x3]
  %v2032 = vlaneseq
  %v2033 = vshrl.u32 %v2032, 7
  %v2034 = vsub.s32 0, %v2033
  %v2035 = vrot.slane %v2030, %v2034
  %v2036 = vlaneseq
  %v2037 = vshrl.u32 %v2036, 7
  %v2038 = vsub.s32 1, %v2037
  %v2039 = vrot.slane %v2030, %v2038
  %v2057 = vunpack.c.l.b16 %v2015
  %v2058 = vunpack.c.h.b16 %v2015
  %v2059 = vunpack.c.l.b16 %v2016
  %v2060 = vunpack.c.h.b16 %v2016
  %v2061 = vunpack.c.l.b16 %v2017
  %v2062 = vunpack.c.h.b16 %v2017
  %v2063 = vunpack.c.l.b16 %v2018
  %v2064 = vunpack.c.h.b16 %v2018
  %v2065 = vunpack.c.l.b16 %v2019
  %v2066 = vunpack.c.h.b16 %v2019
  %v2067 = vunpack.c.l.b16 %v2020
  %v2068 = vunpack.c.h.b16 %v2020
  %v2069 = vunpack.c.l.b16 %v2021
  %v2070 = vunpack.c.h.b16 %v2021
  %v2071 = vunpack.c.l.b16 %v2022
  %v2072 = vunpack.c.h.b16 %v2022
  %v2073 = vunpack.c.l.b16 %v2023
  %v2074 = vunpack.c.h.b16 %v2023
  %v2075 = vunpack.c.l.b16 %v2024
  %v2076 = vunpack.c.h.b16 %v2024
  %v2077 = vunpack.c.l.b16 %v2025
  %v2078 = vunpack.c.h.b16 %v2025
  %v2079 = vunpack.c.l.b16 %v2026
  %v2080 = vunpack.c.h.b16 %v2026
  %v2081 = vunpack.c.l.b16 %v2027
  %v2082 = vunpack.c.h.b16 %v2027
  %v2083 = vunpack.c.l.b16 %v2028
  %v2084 = vunpack.c.h.b16 %v2028
  %v2085 = vunpack.c.l.b16 %v2029
  %v2086 = vunpack.c.h.b16 %v2029
  %v2087 = vpack.c.b16 %v2059, %v2057
  %v2088 = vpack.c.b16 %v2060, %v2058
  %v2089 = vpack.c.b16 %v2063, %v2061
  %v2090 = vpack.c.b16 %v2064, %v2062
  %v2091 = vpack.c.b16 %v2067, %v2065
  %v2092 = vpack.c.b16 %v2068, %v2066
  %v2093 = vpack.c.b16 %v2071, %v2069
  %v2094 = vpack.c.b16 %v2072, %v2070
  %v2095 = vpack.c.b16 %v2075, %v2073
  %v2096 = vpack.c.b16 %v2076, %v2074
  %v2097 = vpack.c.b16 %v2079, %v2077
  %v2098 = vpack.c.b16 %v2080, %v2078
  %v2099 = vpack.c.b16 %v2083, %v2081
  %v2100 = vpack.c.b16 %v2084, %v2082
  %v2101 = vpack.c.b16 %v2085, %v2085
  %v2102 = vpack.c.b16 %v2086, %v2086
  %vm2117 = vcmask 982016
  %v2119 = vsel %vm2117, %v2014, 0
  %vm2121 = vcmask 1043456
  %v2123 = vsel %vm2121, %v2101, 0
  %v2126 = vsel %vm2121, %v2102, 0
  %2128 = vmatprep.subr.bf16.mxu0 %v2126
  %2129 = vmatpush1.bf16.msra.mxu0 %v2123
  %2130 = vmatprep.subr.bf16.mxu0 %v2100
  %2131 = vmatpush1.bf16.msra.mxu0 %v2099
  %2132 = vmatprep.subr.bf16.mxu0 %v2098
  %2133 = vmatpush1.bf16.msra.mxu0 %v2097
  %2134 = vmatprep.subr.bf16.mxu0 %v2096
  %2135 = vmatpush1.bf16.msra.mxu0 %v2095
  %2136 = vmatprep.subr.bf16.mxu0 %v2094
  %2137 = vmatpush1.bf16.msra.mxu0 %v2093
  %2138 = vmatprep.subr.bf16.mxu0 %v2092
  %2139 = vmatpush1.bf16.msra.mxu0 %v2091
  %2140 = vmatprep.subr.bf16.mxu0 %v2090
  %2141 = vmatpush1.bf16.msra.mxu0 %v2089
  %2142 = vmatprep.subr.bf16.mxu0 %v2088
  %2143 = vmatpush1.bf16.msra.mxu0 %v2087
  %2144 = vmatprep.subr.bf16.mxu0 0
  %2145 = vmatpush2.bf16.msra.mxu0 0
  %2146 = vmatprep.subr.bf16.mxu0 0
  %2147 = vmatpush2.bf16.msra.mxu0 0
  %2148 = vmatprep.subr.bf16.mxu0 0
  %2149 = vmatpush2.bf16.msra.mxu0 0
  %2150 = vmatprep.subr.bf16.mxu0 0
  %2151 = vmatpush2.bf16.msra.mxu0 0
  %2152 = vmatprep.subr.bf16.mxu0 0
  %2153 = vmatpush2.bf16.msra.mxu0 0
  %2154 = vmatprep.subr.bf16.mxu0 0
  %2155 = vmatpush2.bf16.msra.mxu0 0
  %2156 = vmatprep.subr.bf16.mxu0 0
  %2157 = vmatpush2.bf16.msra.mxu0 0
  %2158 = vmatprep.subr.bf16.mxu0 0
  %2159 = vmatpush2.bf16.msra.mxu0 0
  %2160 = vmatprep.mubr.bf16.mxu0 0
  %2161 = vmatmul.mubr.bf16.gmra.mxu0 %v2119
  %v2162 = vpop.f32.mrf.mxu0
  %v2163 = vadd.f32 %v2035, %v2162
  %v2164 = vpop.f32.mrf.mxu0
  %v2165 = vadd.f32 %v2039, %v2164
  %v2166 = vpop.f32.mrf.mxu0
  %v2167 = vpop.f32.mrf.mxu0
  %2168 = vdwg.mxu0
  %2169 = vst [vmem:[%s11] sm:$0xff] %v2163
  %2170 = vst [vmem:[%s11 + $0x8] sm:$0xff] %v2165
  // Predicated region
  $region46: #{nn5_forward.1} parent=0 // pred_check
    _
  $region47: #{nn5_forward.1} parent=0 // pred_check_branch
    %2172 = sbr.rel (0) target = $region49
  $region48: #{nn5_forward.1} parent=0 // pred_region
    _
  $region49: #{nn5_forward.1} parent=0 // pred_fallthru
    _
  // Predicated region
  $region50: #{nn5_forward.1} parent=0 // pred_check
    _
  $region51: #{nn5_forward.1} parent=0 // pred_check_branch
    %2174 = sbr.rel (0) target = $region53
  $region52: #{nn5_forward.1} parent=0 // pred_region
    _
  $region53: #{nn5_forward.1} parent=0 // pred_fallthru
    _

</llo_original>
